<compile_context>
chip_gen: v6e
topology: v6e:2x2x1
jax: 0.10.0
libtpu: 0.0.40
codegen_flags: <defaults>
</compile_context>

<pallas_src>
import jax
import jax.numpy as jnp
from jax.experimental import pallas as pl
from jax.experimental.pallas import tpu as pltpu

# ---------------- module / problem configuration (static) -------------------
CIN, COUT = 4, 64               # in_channels, out_channels
KSIZE, STRIDE, DIL, PAD = 3, 1, 1, 1
N, H, W = 2, 16, 16             # small demo input (NCHW)

assert STRIDE == 1  # TODO(synk): stride > 1 needs strided pl.ds row/col loads.

HP, WP = H + 2 * PAD, W + 2 * PAD
HO = (H + 2 * PAD - DIL * (KSIZE - 1) - 1) // STRIDE + 1
WO = (W + 2 * PAD - DIL * (KSIZE - 1) - 1) // STRIDE + 1

LANE, SUB = 128, 8
CPAD = ((COUT + LANE - 1) // LANE) * LANE       # lane-dense conv-output channels
CIN_P = ((CIN + SUB - 1) // SUB) * SUB          # sublane-aligned per-tap channels
KDIM = KSIZE * KSIZE * CIN_P                    # concatenated contraction dim (72)

M_TILE = HO * WO                                # conv rows per batch (256)
M_TOTAL = N * M_TILE                            # BN reduction count

BN_EPS = 1e-3                                   # nn.BatchNorm2d(eps=0.001)
NEG_SLOPE = 0.2

_COMPILER_PARAMS = pltpu.CompilerParams(
    # BN couples every grid step (global batch statistics) -> sequential axis.
    dimension_semantics=("arbitrary",),
)


# ---------------------------------------------------------------------------
# Fused kernel: per-batch conv tile -> VMEM scratch; on the last step fold the
# exact batch statistics, apply scale/shift + LeakyReLU and write the full
# channel-major output (resident in VMEM across the whole grid).
# ---------------------------------------------------------------------------
def fused_kernel(x_ref, w_ref, g_ref, b_ref, o_ref, yall_ref):
    """x: (1, HP, WP, CIN_P) bf16, w: (KDIM, CPAD) bf16, gamma/beta: (1, CPAD) f32.

    o: (N, COUT, HO*WO) f32 (channel-major, lane-dense),
    yall scratch: (N, M_TILE, CPAD) f32 conv intermediate.
    """
    n = pl.program_id(0)

    # --- conv for this batch: one K=KDIM matmul over the 9 concatenated taps ---
    taps = []
    for kh in range(KSIZE):
        for kw in range(KSIZE):
            # Shifted (HO, WO, CIN_P) window of the padded activation.
            taps.append(x_ref[0, pl.ds(kh * DIL, HO), pl.ds(kw * DIL, WO), :])
    lhs = jnp.concatenate(taps, axis=-1).reshape(M_TILE, KDIM)      # bf16
    acc = jnp.dot(lhs, w_ref[...], preferred_element_type=jnp.float32)
    yall_ref[pl.ds(n, 1), :, :] = acc[None]                         # f32 scratch

    # --- last step: exact two-pass batch stats + scale/shift + LeakyReLU ------
    @pl.when(n == N - 1)
    def _():
        y = yall_ref[...]                                           # (N, M, CPAD)
        inv_m = 1.0 / float(M_TOTAL)
        mean = jnp.sum(y, axis=(0, 1), keepdims=True) * inv_m
        d = y - mean
        var = jnp.sum(d * d, axis=(0, 1), keepdims=True) * inv_m    # biased var
        scale = g_ref[...].reshape(1, 1, CPAD) * jax.lax.rsqrt(var + BN_EPS)
        shift = b_ref[...].reshape(1, 1, CPAD) - mean * scale
        z = y * scale + shift
        z = jnp.where(z > 0, z, NEG_SLOPE * z)                      # LeakyReLU(0.2)
        # Channel-major, lane-dense store: (N, M, CPAD) -> (N, CPAD, M) -> keep COUT.
        zt = jnp.transpose(z, (0, 2, 1))
        o_ref[...] = zt[:, :COUT, :]


# ---------------------------------------------------------------------------
# Hoisted parameter preparation (done once, not per forward)
# ---------------------------------------------------------------------------
def prepare_params(key):
    kw_key, kb_key = jax.random.split(key)
    w = 0.1 * jax.random.normal(kw_key, (COUT, CIN, KSIZE, KSIZE), jnp.float32)
    b = 0.05 * jax.random.normal(kb_key, (COUT,), jnp.float32)      # cancels under BN
    gamma = jnp.ones((COUT,), jnp.float32)                          # fresh BatchNorm2d
    beta = jnp.zeros((COUT,), jnp.float32)

    # (Cout, Cin, kh, kw) -> (kh, kw, Cin_pad, Cout_pad) -> (KDIM, CPAD) bf16
    wt = jnp.transpose(w, (2, 3, 1, 0))
    wt = jnp.pad(wt, ((0, 0), (0, 0), (0, CIN_P - CIN), (0, CPAD - COUT)))
    w2d = wt.reshape(KDIM, CPAD).astype(jnp.bfloat16)

    pad_c = (0, CPAD - COUT)
    prepared = dict(
        w2d=w2d,
        gamma=jnp.pad(gamma, pad_c).reshape(1, CPAD),
        beta=jnp.pad(beta, pad_c).reshape(1, CPAD),
    )
    raw = dict(w=w, b=b)
    return prepared, raw


# ---------------------------------------------------------------------------
# Forward pass (NCHW in / NCHW out, like the PyTorch module)
# ---------------------------------------------------------------------------
@jax.jit
def basic_conv2d_forward(x_nchw, params):
    # NCHW -> padded NHWC (channels minor for the tap matmul), bf16 operands.
    xp = jnp.transpose(x_nchw, (0, 2, 3, 1))
    xp = jnp.pad(xp, ((0, 0), (PAD, PAD), (PAD, PAD), (0, CIN_P - CIN)))
    xp = xp.astype(jnp.bfloat16)

    out = pl.pallas_call(
        fused_kernel,
        grid=(N,),
        in_specs=[
            pl.BlockSpec((1, HP, WP, CIN_P), lambda n: (n, 0, 0, 0)),
            pl.BlockSpec((KDIM, CPAD), lambda n: (0, 0)),
            pl.BlockSpec((1, CPAD), lambda n: (0, 0)),
            pl.BlockSpec((1, CPAD), lambda n: (0, 0)),
        ],
        # Constant block index -> output stays resident in VMEM across the grid
        # and is written back to HBM once, after the last step's epilogue.
        out_specs=pl.BlockSpec((N, COUT, HO * WO), lambda n: (0, 0, 0)),
        out_shape=jax.ShapeDtypeStruct((N, COUT, HO * WO), jnp.float32),
        scratch_shapes=[pltpu.VMEM((N, M_TILE, CPAD), jnp.float32)],
        compiler_params=_COMPILER_PARAMS,
    )(xp, params["w2d"], params["gamma"], params["beta"])

    # Output is already channel-major; only a free reshape remains.
    return out.reshape(N, COUT, HO, WO)


# ---------------------------------------------------------------------------
# Plain-JAX reference (same bf16-rounded operands, full PyTorch semantics
# including the conv bias, which cancels exactly under training-mode BN)
# ---------------------------------------------------------------------------
def reference_forward(x_nchw, w, b):
    xb = x_nchw.astype(jnp.bfloat16).astype(jnp.float32)
    wb = w.astype(jnp.bfloat16).astype(jnp.float32)
    y = jax.lax.conv_general_dilated(
        xb, wb,
        window_strides=(STRIDE, STRIDE),
        padding=((PAD, PAD), (PAD, PAD)),
        rhs_dilation=(DIL, DIL),
        dimension_numbers=("NCHW", "OIHW", "NCHW"),
        precision=jax.lax.Precision.HIGHEST,
    )
    y = y + b.reshape(1, COUT, 1, 1)
    mean = jnp.mean(y, axis=(0, 2, 3), keepdims=True)
    var = jnp.mean((y - mean) ** 2, axis=(0, 2, 3), keepdims=True)
    z = (y - mean) * jax.lax.rsqrt(var + BN_EPS)       # gamma=1, beta=0
    return jnp.where(z > 0, z, NEG_SLOPE * z)


if __name__ == "__main__":
    key = jax.random.PRNGKey(0)
    pkey, xkey = jax.random.split(key)

    params, raw = prepare_params(pkey)
    x = jax.random.normal(xkey, (N, CIN, H, W), dtype=jnp.float32)

    out = basic_conv2d_forward(x, params)
    jax.block_until_ready(out)

    assert out.shape == (N, COUT, HO, WO)
    assert bool(jnp.all(jnp.isfinite(out)))

    ref = reference_forward(x, raw["w"], raw["b"])
    err = float(jnp.max(jnp.abs(out - ref)))
    assert err < 1e-2, f"max abs error vs reference too large: {err}"

    print("KERNEL_OK")
</pallas_src>

<mosaic_0001>
module attributes {stable_mosaic.version = 11 : i64} {
  func.func @fused_kernel(%arg0: i32, %arg1: memref<1x18x18x8xbf16, #tpu.memory_space<vmem>>, %arg2: memref<72x128xbf16, #tpu.memory_space<vmem>>, %arg3: memref<1x128xf32, #tpu.memory_space<vmem>>, %arg4: memref<1x128xf32, #tpu.memory_space<vmem>>, %arg5: memref<2x64x256xf32, #tpu.memory_space<vmem>>, %arg6: memref<2x256x128xf32, #tpu.memory_space<vmem>>) attributes {dimension_semantics = [#tpu.dimension_semantics<arbitrary>], iteration_bounds = array<i64: 2>, scalar_prefetch = 0 : i64, scratch_operands = 1 : i64, tpu.core_type = #tpu.core_type<tc>, window_params = [{transform_indices = @transform_0, window_bounds = array<i64: 1, 18, 18, 8>}, {pipeline_mode = #tpu.pipeline_mode<synchronous>, transform_indices = @transform_1, window_bounds = array<i64: 72, 128>}, {pipeline_mode = #tpu.pipeline_mode<synchronous>, transform_indices = @transform_2, window_bounds = array<i64: 1, 128>}, {pipeline_mode = #tpu.pipeline_mode<synchronous>, transform_indices = @transform_3, window_bounds = array<i64: 1, 128>}, {pipeline_mode = #tpu.pipeline_mode<synchronous>, transform_indices = @transform_4, window_bounds = array<i64: 2, 64, 256>}]} {
    %c0 = arith.constant 0 : index
    %c0_0 = arith.constant 0 : index
    %c0_1 = arith.constant 0 : index
    %c0_2 = arith.constant 0 : index
    %0 = vector.load %arg1[%c0, %c0_0, %c0_1, %c0_2] : memref<1x18x18x8xbf16, #tpu.memory_space<vmem>>, vector<1x16x16x8xbf16>
    %1 = vector.shape_cast %0 : vector<1x16x16x8xbf16> to vector<16x16x8xbf16>
    %c0_3 = arith.constant 0 : index
    %c0_4 = arith.constant 0 : index
    %c1 = arith.constant 1 : index
    %c0_5 = arith.constant 0 : index
    %2 = vector.load %arg1[%c0_3, %c0_4, %c1, %c0_5] : memref<1x18x18x8xbf16, #tpu.memory_space<vmem>>, vector<1x16x16x8xbf16>
    %3 = vector.shape_cast %2 : vector<1x16x16x8xbf16> to vector<16x16x8xbf16>
    %c0_6 = arith.constant 0 : index
    %c0_7 = arith.constant 0 : index
    %c2 = arith.constant 2 : index
    %c0_8 = arith.constant 0 : index
    %4 = vector.load %arg1[%c0_6, %c0_7, %c2, %c0_8] : memref<1x18x18x8xbf16, #tpu.memory_space<vmem>>, vector<1x16x16x8xbf16>
    %5 = vector.shape_cast %4 : vector<1x16x16x8xbf16> to vector<16x16x8xbf16>
    %c0_9 = arith.constant 0 : index
    %c1_10 = arith.constant 1 : index
    %c0_11 = arith.constant 0 : index
    %c0_12 = arith.constant 0 : index
    %6 = vector.load %arg1[%c0_9, %c1_10, %c0_11, %c0_12] : memref<1x18x18x8xbf16, #tpu.memory_space<vmem>>, vector<1x16x16x8xbf16>
    %7 = vector.shape_cast %6 : vector<1x16x16x8xbf16> to vector<16x16x8xbf16>
    %c0_13 = arith.constant 0 : index
    %c1_14 = arith.constant 1 : index
    %c1_15 = arith.constant 1 : index
    %c0_16 = arith.constant 0 : index
    %8 = vector.load %arg1[%c0_13, %c1_14, %c1_15, %c0_16] : memref<1x18x18x8xbf16, #tpu.memory_space<vmem>>, vector<1x16x16x8xbf16>
    %9 = vector.shape_cast %8 : vector<1x16x16x8xbf16> to vector<16x16x8xbf16>
    %c0_17 = arith.constant 0 : index
    %c1_18 = arith.constant 1 : index
    %c2_19 = arith.constant 2 : index
    %c0_20 = arith.constant 0 : index
    %10 = vector.load %arg1[%c0_17, %c1_18, %c2_19, %c0_20] : memref<1x18x18x8xbf16, #tpu.memory_space<vmem>>, vector<1x16x16x8xbf16>
    %11 = vector.shape_cast %10 : vector<1x16x16x8xbf16> to vector<16x16x8xbf16>
    %c0_21 = arith.constant 0 : index
    %c2_22 = arith.constant 2 : index
    %c0_23 = arith.constant 0 : index
    %c0_24 = arith.constant 0 : index
    %12 = vector.load %arg1[%c0_21, %c2_22, %c0_23, %c0_24] : memref<1x18x18x8xbf16, #tpu.memory_space<vmem>>, vector<1x16x16x8xbf16>
    %13 = vector.shape_cast %12 : vector<1x16x16x8xbf16> to vector<16x16x8xbf16>
    %c0_25 = arith.constant 0 : index
    %c2_26 = arith.constant 2 : index
    %c1_27 = arith.constant 1 : index
    %c0_28 = arith.constant 0 : index
    %14 = vector.load %arg1[%c0_25, %c2_26, %c1_27, %c0_28] : memref<1x18x18x8xbf16, #tpu.memory_space<vmem>>, vector<1x16x16x8xbf16>
    %15 = vector.shape_cast %14 : vector<1x16x16x8xbf16> to vector<16x16x8xbf16>
    %c0_29 = arith.constant 0 : index
    %c2_30 = arith.constant 2 : index
    %c2_31 = arith.constant 2 : index
    %c0_32 = arith.constant 0 : index
    %16 = vector.load %arg1[%c0_29, %c2_30, %c2_31, %c0_32] : memref<1x18x18x8xbf16, #tpu.memory_space<vmem>>, vector<1x16x16x8xbf16>
    %17 = vector.shape_cast %16 : vector<1x16x16x8xbf16> to vector<16x16x8xbf16>
    %18 = tpu.concatenate %1, %3, %5, %7, %9, %11, %13, %15, %17 in 2 : vector<16x16x8xbf16>, vector<16x16x8xbf16>, vector<16x16x8xbf16>, vector<16x16x8xbf16>, vector<16x16x8xbf16>, vector<16x16x8xbf16>, vector<16x16x8xbf16>, vector<16x16x8xbf16>, vector<16x16x8xbf16> -> vector<16x16x72xbf16>
    %19 = vector.shape_cast %18 : vector<16x16x72xbf16> to vector<256x72xbf16>
    %c0_33 = arith.constant 0 : index
    %c0_34 = arith.constant 0 : index
    %20 = vector.load %arg2[%c0_33, %c0_34] : memref<72x128xbf16, #tpu.memory_space<vmem>>, vector<72x128xbf16>
    %cst = arith.constant dense<0.000000e+00> : vector<256x128xf32>
    %21 = tpu.matmul %19, %20, %cst {dimension_numbers = #tpu.dot_dimension_numbers<[1], [0], [0], [1], [0, 0, 1, 1], [], []>} : vector<256x72xbf16>, vector<72x128xbf16>, vector<256x128xf32> -> vector<256x128xf32>
    %22 = vector.shape_cast %21 : vector<256x128xf32> to vector<1x256x128xf32>
    %23 = arith.index_cast %arg0 : i32 to index
    %c0_35 = arith.constant 0 : index
    %c0_36 = arith.constant 0 : index
    %24 = vector.load %arg6[%23, %c0_35, %c0_36] : memref<2x256x128xf32, #tpu.memory_space<vmem>>, vector<1x256x128xf32>
    tpu.vector_store %arg6[%23, %c0_35, %c0_36], %22 {strides = array<i32>} : memref<2x256x128xf32, #tpu.memory_space<vmem>>, vector<1x256x128xf32>,
    %c1_i32 = arith.constant 1 : i32
    %25 = arith.cmpi eq, %arg0, %c1_i32 : i32
    %26 = arith.extui %25 : i1 to i32
    %c0_i32 = arith.constant 0 : i32
    %27 = arith.cmpi ne, %26, %c0_i32 : i32
    scf.if %27 {
      %c0_37 = arith.constant 0 : index
      %c0_38 = arith.constant 0 : index
      %c0_39 = arith.constant 0 : index
      %28 = vector.load %arg6[%c0_37, %c0_38, %c0_39] : memref<2x256x128xf32, #tpu.memory_space<vmem>>, vector<2x256x128xf32>
      %cst_40 = arith.constant dense<0.000000e+00> : vector<128xf32>
      %29 = vector.multi_reduction <add>, %28, %cst_40 [0, 1] : vector<2x256x128xf32> to vector<128xf32>
      %30 = vector.shape_cast %29 : vector<128xf32> to vector<1x1x128xf32>
      %cst_41 = arith.constant 0.001953125 : f32
      %31 = vector.broadcast %cst_41 : f32 to vector<1x1x128xf32>
      %32 = arith.mulf %30, %31 : vector<1x1x128xf32>
      %33 = vector.broadcast %32 : vector<1x1x128xf32> to vector<2x256x128xf32>
      %34 = arith.subf %28, %33 : vector<2x256x128xf32>
      %35 = arith.mulf %34, %34 : vector<2x256x128xf32>
      %cst_42 = arith.constant dense<0.000000e+00> : vector<128xf32>
      %36 = vector.multi_reduction <add>, %35, %cst_42 [0, 1] : vector<2x256x128xf32> to vector<128xf32>
      %37 = vector.shape_cast %36 : vector<128xf32> to vector<1x1x128xf32>
      %cst_43 = arith.constant 0.001953125 : f32
      %38 = vector.broadcast %cst_43 : f32 to vector<1x1x128xf32>
      %39 = arith.mulf %37, %38 : vector<1x1x128xf32>
      %c0_44 = arith.constant 0 : index
      %c0_45 = arith.constant 0 : index
      %40 = vector.load %arg3[%c0_44, %c0_45] : memref<1x128xf32, #tpu.memory_space<vmem>>, vector<1x128xf32>
      %41 = vector.shape_cast %40 : vector<1x128xf32> to vector<1x1x128xf32>
      %cst_46 = arith.constant 1.000000e-03 : f32
      %42 = vector.broadcast %cst_46 : f32 to vector<1x1x128xf32>
      %43 = arith.addf %39, %42 : vector<1x1x128xf32>
      %44 = math.rsqrt %43 : vector<1x1x128xf32>
      %45 = arith.mulf %41, %44 : vector<1x1x128xf32>
      %c0_47 = arith.constant 0 : index
      %c0_48 = arith.constant 0 : index
      %46 = vector.load %arg4[%c0_47, %c0_48] : memref<1x128xf32, #tpu.memory_space<vmem>>, vector<1x128xf32>
      %47 = vector.shape_cast %46 : vector<1x128xf32> to vector<1x1x128xf32>
      %48 = arith.mulf %32, %45 : vector<1x1x128xf32>
      %49 = arith.subf %47, %48 : vector<1x1x128xf32>
      %50 = vector.broadcast %45 : vector<1x1x128xf32> to vector<2x256x128xf32>
      %51 = arith.mulf %28, %50 : vector<2x256x128xf32>
      %52 = vector.broadcast %49 : vector<1x1x128xf32> to vector<2x256x128xf32>
      %53 = arith.addf %51, %52 : vector<2x256x128xf32>
      %cst_49 = arith.constant 0.000000e+00 : f32
      %54 = vector.broadcast %cst_49 : f32 to vector<2x256x128xf32>
      %55 = arith.cmpf ogt, %53, %54 : vector<2x256x128xf32>
      %cst_50 = arith.constant 2.000000e-01 : f32
      %56 = vector.broadcast %cst_50 : f32 to vector<2x256x128xf32>
      %57 = arith.mulf %56, %53 : vector<2x256x128xf32>
      %58 = arith.select %55, %53, %57 : vector<2x256x128xi1>, vector<2x256x128xf32>
      %59 = tpu.transpose %58, [0, 2, 1] : vector<2x256x128xf32> -> vector<2x128x256xf32>
      %60 = vector.extract_strided_slice %59 {offsets = [0, 0, 0], sizes = [2, 64, 256], strides = [1, 1, 1]} : vector<2x128x256xf32> to vector<2x64x256xf32>
      %c0_51 = arith.constant 0 : index
      %c0_52 = arith.constant 0 : index
      %c0_53 = arith.constant 0 : index
      %61 = vector.load %arg5[%c0_51, %c0_52, %c0_53] : memref<2x64x256xf32, #tpu.memory_space<vmem>>, vector<2x64x256xf32>
      tpu.vector_store %arg5[%c0_51, %c0_52, %c0_53], %60 {strides = array<i32>} : memref<2x64x256xf32, #tpu.memory_space<vmem>>, vector<2x64x256xf32>,
    } else {
    }
    return
  }
  func.func @transform_0(%arg0: i32) -> (i32, i32, i32, i32) {
    %c0_i32 = arith.constant 0 : i32
    %c0_i32_0 = arith.constant 0 : i32
    %c0_i32_1 = arith.constant 0 : i32
    %c0_i32_2 = arith.constant 0 : i32
    return %arg0, %c0_i32, %c0_i32_0, %c0_i32_1 : i32, i32, i32, i32
  }
  func.func @transform_1(%arg0: i32) -> (i32, i32) {
    %c0_i32 = arith.constant 0 : i32
    %c0_i32_0 = arith.constant 0 : i32
    %c0_i32_1 = arith.constant 0 : i32
    return %c0_i32, %c0_i32_0 : i32, i32
  }
  func.func @transform_2(%arg0: i32) -> (i32, i32) {
    %c0_i32 = arith.constant 0 : i32
    %c0_i32_0 = arith.constant 0 : i32
    %c0_i32_1 = arith.constant 0 : i32
    return %c0_i32, %c0_i32_0 : i32, i32
  }
  func.func @transform_3(%arg0: i32) -> (i32, i32) {
    %c0_i32 = arith.constant 0 : i32
    %c0_i32_0 = arith.constant 0 : i32
    %c0_i32_1 = arith.constant 0 : i32
    return %c0_i32, %c0_i32_0 : i32, i32
  }
  func.func @transform_4(%arg0: i32) -> (i32, i32, i32) {
    %c0_i32 = arith.constant 0 : i32
    %c0_i32_0 = arith.constant 0 : i32
    %c0_i32_1 = arith.constant 0 : i32
    %c0_i32_2 = arith.constant 0 : i32
    return %c0_i32, %c0_i32_0, %c0_i32_1 : i32, i32, i32
  }
}

</mosaic_0001>

<llo_original>
// kernel: basic_conv2d_forward.1
$region0: #{basic_conv2d_forward.1}
  #allocation0 [shape = 'u32[]', space=smem, size = 0x4, offset = 0x4, fixed_abs, tag = 'smem constant byte address 0x4 - core index']
  #allocation1 [shape = 'u32[144,128]{1,0:T(1,128)}', space=vmem, size = 0x12000, scoped, tag = 'internal scratch']
  #allocation2 [shape = 'f32[2,256,128]{2,1,0:T(8,128)}', space=vmem, size = 0x40000, scoped, tag = 'scratch operand']
  %s0 = inlined_call_operand.vmem [shape: bf16[2,18,18,8], index: 0, kind: input, shape index: {}]
  %s1 = inlined_call_operand.vmem [shape: bf16[72,128], index: 1, kind: input, shape index: {}]
  %s2 = inlined_call_operand.vmem [shape: f32[1,128], index: 2, kind: input, shape index: {}]
  %s3 = inlined_call_operand.vmem [shape: f32[1,128], index: 3, kind: input, shape index: {}]
  %s4 = inlined_call_operand.vmem [shape: f32[2,64,256], index: 4, kind: output, shape index: {}]
  %s5 = sld [smem:[#allocation0]]
  $region53: #{basic_conv2d_forward.1} parent=0
    _
  %s7 = ssub.s32 1, %s5
  %s8 = scalar_select 0, %s7, %s5
  loop: start=0, step=1, limit=4
  $region2: #{basic_conv2d_forward.1} parent=0 // loop_pre_header
    _
  $region3: #{basic_conv2d_forward.1} parent=0 // loop_header
    %s10 = sphi 0, %s14
    %p11 = scmp.ge.s32.totalorder %s10, 4
    %s20 = sphi 0, %s22
    %s23 = sphi 0, %s20
    %s24 = sphi 0, %s23
    %s40 = sphi 0, %s24
    %s44 = sphi 0, %s44
    %s46 = sphi 0, %s44
    %s47 = sphi 0, %s46
    %s61 = sphi 0, %s47
    %s65 = sphi 0, %s65
    %s67 = sphi 0, %s65
    %s68 = sphi 0, %s67
    %s82 = sphi 0, %s68
    %s86 = sphi 0, %s86
    %s88 = sphi 0, %s86
    %s89 = sphi 0, %s88
    %s103 = sphi 0, %s89
    %s107 = sphi 0, %s107
    %s109 = sphi 0, %s107
    %s110 = sphi 0, %s109
    %s124 = sphi 0, %s110
  $region4: #{basic_conv2d_forward.1} parent=0 // loop_header_branch
    %13 = sbr.rel (%p11) target = $region8
  $region5: #{basic_conv2d_forward.1} parent=0 // loop_body
    %s15 = ssub.s32 %s10, 1
    %s16 = ssub.s32 %s10, 2
    %s17 = sadd.s32 %s10, 1
    %s18 = ssub.s32 %s10, %s17
    %p19 = scmp.eq.s32.totalorder %s18, 0
    %s21 = sadd.s32 %s20, 1
    %s22 = scalar_select %p19, %s20, %s21
    %p25 = pneg %p19
    %p26 = scmp.eq.s32.totalorder %s10, 1
    %p27 = por %p25, %p26
    %p28 = scmp.ne.s32.totalorder %s20, %s23
    %p29 = scmp.eq.s32.totalorder %s10, 0
    %p30 = por %p28, %p29
    %p31 = scmp.ne.s32.totalorder %s20, %s23
    %p32 = scmp.eq.s32.totalorder %s15, 1
    %p33 = por %p31, %p32
    %p34 = scmp.ne.s32.totalorder %s23, %s24
    %p35 = scmp.eq.s32.totalorder %s15, 0
    %p36 = por %p34, %p35
    %p37 = scmp.ne.s32.totalorder %s23, %s24
    %p38 = scmp.eq.s32.totalorder %s16, 1
    %p39 = por %p37, %p38
    %p41 = scmp.ne.s32.totalorder %s24, %s40
    %p42 = scmp.eq.s32.totalorder %s16, 0
    %p43 = por %p41, %p42
    %s45 = sadd.s32 %s44, 1
    %p48 = scmp.eq.s32.totalorder %s10, 1
    %p49 = scmp.ne.s32.totalorder %s44, %s46
    %p50 = scmp.eq.s32.totalorder %s10, 0
    %p51 = por %p49, %p50
    %p52 = scmp.ne.s32.totalorder %s44, %s46
    %p53 = scmp.eq.s32.totalorder %s15, 1
    %p54 = por %p52, %p53
    %p55 = scmp.ne.s32.totalorder %s46, %s47
    %p56 = scmp.eq.s32.totalorder %s15, 0
    %p57 = por %p55, %p56
    %p58 = scmp.ne.s32.totalorder %s46, %s47
    %p59 = scmp.eq.s32.totalorder %s16, 1
    %p60 = por %p58, %p59
    %p62 = scmp.ne.s32.totalorder %s47, %s61
    %p63 = scmp.eq.s32.totalorder %s16, 0
    %p64 = por %p62, %p63
    %s66 = sadd.s32 %s65, 1
    %p69 = scmp.eq.s32.totalorder %s10, 1
    %p70 = scmp.ne.s32.totalorder %s65, %s67
    %p71 = scmp.eq.s32.totalorder %s10, 0
    %p72 = por %p70, %p71
    %p73 = scmp.ne.s32.totalorder %s65, %s67
    %p74 = scmp.eq.s32.totalorder %s15, 1
    %p75 = por %p73, %p74
    %p76 = scmp.ne.s32.totalorder %s67, %s68
    %p77 = scmp.eq.s32.totalorder %s15, 0
    %p78 = por %p76, %p77
    %p79 = scmp.ne.s32.totalorder %s67, %s68
    %p80 = scmp.eq.s32.totalorder %s16, 1
    %p81 = por %p79, %p80
    %p83 = scmp.ne.s32.totalorder %s68, %s82
    %p84 = scmp.eq.s32.totalorder %s16, 0
    %p85 = por %p83, %p84
    %s87 = sadd.s32 %s86, 1
    %p90 = scmp.eq.s32.totalorder %s10, 1
    %p91 = scmp.ne.s32.totalorder %s86, %s88
    %p92 = scmp.eq.s32.totalorder %s10, 0
    %p93 = por %p91, %p92
    %p94 = scmp.ne.s32.totalorder %s86, %s88
    %p95 = scmp.eq.s32.totalorder %s15, 1
    %p96 = por %p94, %p95
    %p97 = scmp.ne.s32.totalorder %s88, %s89
    %p98 = scmp.eq.s32.totalorder %s15, 0
    %p99 = por %p97, %p98
    %p100 = scmp.ne.s32.totalorder %s88, %s89
    %p101 = scmp.eq.s32.totalorder %s16, 1
    %p102 = por %p100, %p101
    %p104 = scmp.ne.s32.totalorder %s89, %s103
    %p105 = scmp.eq.s32.totalorder %s16, 0
    %p106 = por %p104, %p105
    %s108 = sadd.s32 %s107, 1
    %p111 = scmp.eq.s32.totalorder %s10, 1
    %p112 = scmp.ne.s32.totalorder %s107, %s109
    %p113 = scmp.eq.s32.totalorder %s10, 0
    %p114 = por %p112, %p113
    %p115 = scmp.ne.s32.totalorder %s107, %s109
    %p116 = scmp.eq.s32.totalorder %s15, 1
    %p117 = por %p115, %p116
    %p118 = scmp.ne.s32.totalorder %s109, %s110
    %p119 = scmp.eq.s32.totalorder %s15, 0
    %p120 = por %p118, %p119
    %p121 = scmp.ne.s32.totalorder %s109, %s110
    %p122 = scmp.eq.s32.totalorder %s16, 1
    %p123 = por %p121, %p122
    %p125 = scmp.ne.s32.totalorder %s110, %s124
    %p126 = scmp.eq.s32.totalorder %s16, 0
    %p127 = por %p125, %p126
    %p128 = scmp.le.s32.totalorder 1, %s10
    %p129 = scmp.lt.s32.totalorder %s10, 3
    %p130 = pnand %p128, %p129
    %p131 = pneg %p130
    // Predicated region
    $region9: #{basic_conv2d_forward.1} parent=5 // pred_check
      _
    $region10: #{basic_conv2d_forward.1} parent=5 // pred_check_branch
      %133 = sbr.rel (%p130) target = $region12
    $region11: #{basic_conv2d_forward.1} parent=5 // pred_region
      %s134 = ssub.s32 %s10, 1
      // Predicated region
      $region13: #{basic_conv2d_forward.1} parent=11 // pred_check
        %p135 = pneg %p57
      $region14: #{basic_conv2d_forward.1} parent=11 // pred_check_branch
        %137 = sbr.rel (%p135) target = $region16
      $region15: #{basic_conv2d_forward.1} parent=11 // pred_region
        _
      $region16: #{basic_conv2d_forward.1} parent=11 // pred_fallthru
        _
      // Predicated region
      $region17: #{basic_conv2d_forward.1} parent=11 // pred_check
        %p138 = pneg %p78
      $region18: #{basic_conv2d_forward.1} parent=11 // pred_check_branch
        %140 = sbr.rel (%p138) target = $region20
      $region19: #{basic_conv2d_forward.1} parent=11 // pred_region
        _
      $region20: #{basic_conv2d_forward.1} parent=11 // pred_fallthru
        _
      // Predicated region
      $region21: #{basic_conv2d_forward.1} parent=11 // pred_check
        %p141 = pneg %p99
      $region22: #{basic_conv2d_forward.1} parent=11 // pred_check_branch
        %143 = sbr.rel (%p141) target = $region24
      $region23: #{basic_conv2d_forward.1} parent=11 // pred_region
        _
      $region24: #{basic_conv2d_forward.1} parent=11 // pred_fallthru
        _
    $region12: #{basic_conv2d_forward.1} parent=5 // pred_fallthru
      _
    %p144 = scmp.lt.s32.totalorder %s10, 2
    // Predicated region
    $region25: #{basic_conv2d_forward.1} parent=5 // pred_check
      %p145 = pneg %p144
    $region26: #{basic_conv2d_forward.1} parent=5 // pred_check_branch
      %147 = sbr.rel (%p145) target = $region28
    $region27: #{basic_conv2d_forward.1} parent=5 // pred_region
      // Predicated region
      $region29: #{basic_conv2d_forward.1} parent=27 // pred_check
        %p148 = pneg %p30
      $region30: #{basic_conv2d_forward.1} parent=27 // pred_check_branch
        %150 = sbr.rel (%p148) target = $region32
      $region31: #{basic_conv2d_forward.1} parent=27 // pred_region
        %p151 = scmp.lt.s32.totalorder %s10, 1
        %s152 = scalar_select %p151, %s10, 1
        %s153 = smul.addr %s152, 54
        %s154 = smul.addr %s153, 4
        %s155 = scalar_lea.vmem %s0, %s154
      $region32: #{basic_conv2d_forward.1} parent=27 // pred_fallthru
        _
    $region28: #{basic_conv2d_forward.1} parent=5 // pred_fallthru
      _
    %p156 = scmp.le.s32.totalorder 1, %s10
    %p157 = scmp.lt.s32.totalorder %s10, 3
    %p158 = pnand %p156, %p157
    %p159 = pneg %p158
    // Predicated region
    $region33: #{basic_conv2d_forward.1} parent=5 // pred_check
      _
    $region34: #{basic_conv2d_forward.1} parent=5 // pred_check_branch
      %161 = sbr.rel (%p158) target = $region36
    $region35: #{basic_conv2d_forward.1} parent=5 // pred_region
      %s162 = ssub.s32 %s10, 1
      %p163 = scmp.lt.s32.totalorder %s15, 1
      %s164 = scalar_select %p163, %s15, 1
      %s165 = smul.addr %s164, 54
      %s166 = smul.addr %s165, 4
      %s167 = scalar_lea.vmem %s0, %s166
      %p168 = pneg %p36
      %p169 = pneg %p33
      %p170 = pneg %p57
      %p171 = pneg %p54
      %p172 = pneg %p78
      %p173 = pneg %p75
      %p174 = pneg %p99
      %p175 = pneg %p96
      %p176 = pneg %p120
      %p177 = pneg %p117
      %p178 = scmp.lt.s32.totalorder %s15, 1
      %s179 = scalar_select %p178, %s15, 1
      %s180 = smul.addr %s179, 54
      %s181 = smul.addr %s180, 4
      %s182 = scalar_lea.vmem %s0, %s181
      %v184 = vld [vmem:[%s182] sm:$0xf]
      %v185 = vld [vmem:[%s182 + $0x4] sm:$0xf]
      %v186 = vld [vmem:[%s182 + $0xc] sm:$0xf]
      %v187 = vld [vmem:[%s182 + $0x10] sm:$0xf]
      %v188 = vld [vmem:[%s182 + $0x18] sm:$0xf]
      %v189 = vld [vmem:[%s182 + $0x1c] sm:$0xf]
      %v190 = vld [vmem:[%s182 + $0x24] sm:$0xf]
      %v191 = vld [vmem:[%s182 + $0x28] sm:$0xf]
      %v192 = vld [vmem:[%s182 + $0x30] sm:$0xf]
      %v193 = vld [vmem:[%s182 + $0x34] sm:$0xf]
      %v194 = vld [vmem:[%s182 + $0x3c] sm:$0xf]
      %v195 = vld [vmem:[%s182 + $0x40] sm:$0xf]
      %v196 = vld [vmem:[%s182 + $0x48] sm:$0xf]
      %v197 = vld [vmem:[%s182 + $0x4c] sm:$0xf]
      %v198 = vld [vmem:[%s182 + $0x54] sm:$0xf]
      %v199 = vld [vmem:[%s182 + $0x58] sm:$0xf]
      %v200 = vld [vmem:[%s182 + $0x60] sm:$0xf]
      %v201 = vld [vmem:[%s182 + $0x64] sm:$0xf]
      %v202 = vld [vmem:[%s182 + $0x6c] sm:$0xf]
      %v203 = vld [vmem:[%s182 + $0x70] sm:$0xf]
      %v204 = vld [vmem:[%s182 + $0x78] sm:$0xf]
      %v205 = vld [vmem:[%s182 + $0x7c] sm:$0xf]
      %v206 = vld [vmem:[%s182 + $0x84] sm:$0xf]
      %v207 = vld [vmem:[%s182 + $0x88] sm:$0xf]
      %v208 = vld [vmem:[%s182 + $0x90] sm:$0xf]
      %v209 = vld [vmem:[%s182 + $0x94] sm:$0xf]
      %v210 = vld [vmem:[%s182 + $0x9c] sm:$0xf]
      %v211 = vld [vmem:[%s182 + $0xa0] sm:$0xf]
      %v212 = vld [vmem:[%s182 + $0xa8] sm:$0xf]
      %v213 = vld [vmem:[%s182 + $0xac] sm:$0xf]
      %v214 = vld [vmem:[%s182 + $0xb4] sm:$0xf]
      %v215 = vld [vmem:[%s182 + $0xb8] sm:$0xf]
      %v216 = vld [vmem:[%s182 + $0x8] sm:$0x1]
      %v217 = vld [vmem:[%s182 + $0x14] sm:$0x1]
      %v218 = vld [vmem:[%s182 + $0x20] sm:$0x1]
      %v219 = vld [vmem:[%s182 + $0x2c] sm:$0x1]
      %v220 = vld [vmem:[%s182 + $0x38] sm:$0x1]
      %v221 = vld [vmem:[%s182 + $0x44] sm:$0x1]
      %v222 = vld [vmem:[%s182 + $0x50] sm:$0x1]
      %v223 = vld [vmem:[%s182 + $0x5c] sm:$0x1]
      %v224 = vld [vmem:[%s182 + $0x68] sm:$0x1]
      %v225 = vld [vmem:[%s182 + $0x74] sm:$0x1]
      %v226 = vld [vmem:[%s182 + $0x80] sm:$0x1]
      %v227 = vld [vmem:[%s182 + $0x8c] sm:$0x1]
      %v228 = vld [vmem:[%s182 + $0x98] sm:$0x1]
      %v229 = vld [vmem:[%s182 + $0xa4] sm:$0x1]
      %v230 = vld [vmem:[%s182 + $0xb0] sm:$0x1]
      %v231 = vld [vmem:[%s182 + $0xbc] sm:$0x1]
      %v232 = vld [vmem:[%s182] sm:$0xe]
      %v233 = vld [vmem:[%s182 + $0xc] sm:$0xe]
      %v234 = vld [vmem:[%s182 + $0x18] sm:$0xe]
      %v235 = vld [vmem:[%s182 + $0x24] sm:$0xe]
      %v236 = vld [vmem:[%s182 + $0x30] sm:$0xe]
      %v237 = vld [vmem:[%s182 + $0x3c] sm:$0xe]
      %v238 = vld [vmem:[%s182 + $0x48] sm:$0xe]
      %v239 = vld [vmem:[%s182 + $0x54] sm:$0xe]
      %v240 = vld [vmem:[%s182 + $0x60] sm:$0xe]
      %v241 = vld [vmem:[%s182 + $0x6c] sm:$0xe]
      %v242 = vld [vmem:[%s182 + $0x78] sm:$0xe]
      %v243 = vld [vmem:[%s182 + $0x84] sm:$0xe]
      %v244 = vld [vmem:[%s182 + $0x90] sm:$0xe]
      %v245 = vld [vmem:[%s182 + $0x9c] sm:$0xe]
      %v246 = vld [vmem:[%s182 + $0xa8] sm:$0xe]
      %v247 = vld [vmem:[%s182 + $0xb4] sm:$0xe]
      %s248 = scalar_lea.vmem %s182, 12
      %v249 = vld [vmem:[%s248] sm:$0xf]
      %v250 = vld [vmem:[%s248 + $0x4] sm:$0xf]
      %v251 = vld [vmem:[%s248 + $0xc] sm:$0xf]
      %v252 = vld [vmem:[%s248 + $0x10] sm:$0xf]
      %v253 = vld [vmem:[%s248 + $0x18] sm:$0xf]
      %v254 = vld [vmem:[%s248 + $0x1c] sm:$0xf]
      %v255 = vld [vmem:[%s248 + $0x24] sm:$0xf]
      %v256 = vld [vmem:[%s248 + $0x28] sm:$0xf]
      %v257 = vld [vmem:[%s248 + $0x30] sm:$0xf]
      %v258 = vld [vmem:[%s248 + $0x34] sm:$0xf]
      %v259 = vld [vmem:[%s248 + $0x3c] sm:$0xf]
      %v260 = vld [vmem:[%s248 + $0x40] sm:$0xf]
      %v261 = vld [vmem:[%s248 + $0x48] sm:$0xf]
      %v262 = vld [vmem:[%s248 + $0x4c] sm:$0xf]
      %v263 = vld [vmem:[%s248 + $0x54] sm:$0xf]
      %v264 = vld [vmem:[%s248 + $0x58] sm:$0xf]
      %v265 = vld [vmem:[%s248 + $0x60] sm:$0xf]
      %v266 = vld [vmem:[%s248 + $0x64] sm:$0xf]
      %v267 = vld [vmem:[%s248 + $0x6c] sm:$0xf]
      %v268 = vld [vmem:[%s248 + $0x70] sm:$0xf]
      %v269 = vld [vmem:[%s248 + $0x78] sm:$0xf]
      %v270 = vld [vmem:[%s248 + $0x7c] sm:$0xf]
      %v271 = vld [vmem:[%s248 + $0x84] sm:$0xf]
      %v272 = vld [vmem:[%s248 + $0x88] sm:$0xf]
      %v273 = vld [vmem:[%s248 + $0x90] sm:$0xf]
      %v274 = vld [vmem:[%s248 + $0x94] sm:$0xf]
      %v275 = vld [vmem:[%s248 + $0x9c] sm:$0xf]
      %v276 = vld [vmem:[%s248 + $0xa0] sm:$0xf]
      %v277 = vld [vmem:[%s248 + $0xa8] sm:$0xf]
      %v278 = vld [vmem:[%s248 + $0xac] sm:$0xf]
      %v279 = vld [vmem:[%s248 + $0xb4] sm:$0xf]
      %v280 = vld [vmem:[%s248 + $0xb8] sm:$0xf]
      %v281 = vld [vmem:[%s248 + $0x8] sm:$0x1]
      %v282 = vld [vmem:[%s248 + $0x14] sm:$0x1]
      %v283 = vld [vmem:[%s248 + $0x20] sm:$0x1]
      %v284 = vld [vmem:[%s248 + $0x2c] sm:$0x1]
      %v285 = vld [vmem:[%s248 + $0x38] sm:$0x1]
      %v286 = vld [vmem:[%s248 + $0x44] sm:$0x1]
      %v287 = vld [vmem:[%s248 + $0x50] sm:$0x1]
      %v288 = vld [vmem:[%s248 + $0x5c] sm:$0x1]
      %v289 = vld [vmem:[%s248 + $0x68] sm:$0x1]
      %v290 = vld [vmem:[%s248 + $0x74] sm:$0x1]
      %v291 = vld [vmem:[%s248 + $0x80] sm:$0x1]
      %v292 = vld [vmem:[%s248 + $0x8c] sm:$0x1]
      %v293 = vld [vmem:[%s248 + $0x98] sm:$0x1]
      %v294 = vld [vmem:[%s248 + $0xa4] sm:$0x1]
      %v295 = vld [vmem:[%s248 + $0xb0] sm:$0x1]
      %v296 = vld [vmem:[%s248 + $0xbc] sm:$0x1]
      %v297 = vld [vmem:[%s248] sm:$0xe]
      %v298 = vld [vmem:[%s248 + $0xc] sm:$0xe]
      %v299 = vld [vmem:[%s248 + $0x18] sm:$0xe]
      %v300 = vld [vmem:[%s248 + $0x24] sm:$0xe]
      %v301 = vld [vmem:[%s248 + $0x30] sm:$0xe]
      %v302 = vld [vmem:[%s248 + $0x3c] sm:$0xe]
      %v303 = vld [vmem:[%s248 + $0x48] sm:$0xe]
      %v304 = vld [vmem:[%s248 + $0x54] sm:$0xe]
      %v305 = vld [vmem:[%s248 + $0x60] sm:$0xe]
      %v306 = vld [vmem:[%s248 + $0x6c] sm:$0xe]
      %v307 = vld [vmem:[%s248 + $0x78] sm:$0xe]
      %v308 = vld [vmem:[%s248 + $0x84] sm:$0xe]
      %v309 = vld [vmem:[%s248 + $0x90] sm:$0xe]
      %v310 = vld [vmem:[%s248 + $0x9c] sm:$0xe]
      %v311 = vld [vmem:[%s248 + $0xa8] sm:$0xe]
      %v312 = vld [vmem:[%s248 + $0xb4] sm:$0xe]
      %s313 = scalar_lea.vmem %s182, 24
      %v314 = vld [vmem:[%s313] sm:$0xf]
      %v315 = vld [vmem:[%s313 + $0x4] sm:$0xf]
      %v316 = vld [vmem:[%s313 + $0xc] sm:$0xf]
      %v317 = vld [vmem:[%s313 + $0x10] sm:$0xf]
      %v318 = vld [vmem:[%s313 + $0x18] sm:$0xf]
      %v319 = vld [vmem:[%s313 + $0x1c] sm:$0xf]
      %v320 = vld [vmem:[%s313 + $0x24] sm:$0xf]
      %v321 = vld [vmem:[%s313 + $0x28] sm:$0xf]
      %v322 = vld [vmem:[%s313 + $0x30] sm:$0xf]
      %v323 = vld [vmem:[%s313 + $0x34] sm:$0xf]
      %v324 = vld [vmem:[%s313 + $0x3c] sm:$0xf]
      %v325 = vld [vmem:[%s313 + $0x40] sm:$0xf]
      %v326 = vld [vmem:[%s313 + $0x48] sm:$0xf]
      %v327 = vld [vmem:[%s313 + $0x4c] sm:$0xf]
      %v328 = vld [vmem:[%s313 + $0x54] sm:$0xf]
      %v329 = vld [vmem:[%s313 + $0x58] sm:$0xf]
      %v330 = vld [vmem:[%s313 + $0x60] sm:$0xf]
      %v331 = vld [vmem:[%s313 + $0x64] sm:$0xf]
      %v332 = vld [vmem:[%s313 + $0x6c] sm:$0xf]
      %v333 = vld [vmem:[%s313 + $0x70] sm:$0xf]
      %v334 = vld [vmem:[%s313 + $0x78] sm:$0xf]
      %v335 = vld [vmem:[%s313 + $0x7c] sm:$0xf]
      %v336 = vld [vmem:[%s313 + $0x84] sm:$0xf]
      %v337 = vld [vmem:[%s313 + $0x88] sm:$0xf]
      %v338 = vld [vmem:[%s313 + $0x90] sm:$0xf]
      %v339 = vld [vmem:[%s313 + $0x94] sm:$0xf]
      %v340 = vld [vmem:[%s313 + $0x9c] sm:$0xf]
      %v341 = vld [vmem:[%s313 + $0xa0] sm:$0xf]
      %v342 = vld [vmem:[%s313 + $0xa8] sm:$0xf]
      %v343 = vld [vmem:[%s313 + $0xac] sm:$0xf]
      %v344 = vld [vmem:[%s313 + $0xb4] sm:$0xf]
      %v345 = vld [vmem:[%s313 + $0xb8] sm:$0xf]
      %v346 = vld [vmem:[%s313 + $0x8] sm:$0x1]
      %v347 = vld [vmem:[%s313 + $0x14] sm:$0x1]
      %v348 = vld [vmem:[%s313 + $0x20] sm:$0x1]
      %v349 = vld [vmem:[%s313 + $0x2c] sm:$0x1]
      %v350 = vld [vmem:[%s313 + $0x38] sm:$0x1]
      %v351 = vld [vmem:[%s313 + $0x44] sm:$0x1]
      %v352 = vld [vmem:[%s313 + $0x50] sm:$0x1]
      %v353 = vld [vmem:[%s313 + $0x5c] sm:$0x1]
      %v354 = vld [vmem:[%s313 + $0x68] sm:$0x1]
      %v355 = vld [vmem:[%s313 + $0x74] sm:$0x1]
      %v356 = vld [vmem:[%s313 + $0x80] sm:$0x1]
      %v357 = vld [vmem:[%s313 + $0x8c] sm:$0x1]
      %v358 = vld [vmem:[%s313 + $0x98] sm:$0x1]
      %v359 = vld [vmem:[%s313 + $0xa4] sm:$0x1]
      %v360 = vld [vmem:[%s313 + $0xb0] sm:$0x1]
      %v361 = vld [vmem:[%s313 + $0xbc] sm:$0x1]
      %v362 = vld [vmem:[%s313] sm:$0xe]
      %v363 = vld [vmem:[%s313 + $0xc] sm:$0xe]
      %v364 = vld [vmem:[%s313 + $0x18] sm:$0xe]
      %v365 = vld [vmem:[%s313 + $0x24] sm:$0xe]
      %v366 = vld [vmem:[%s313 + $0x30] sm:$0xe]
      %v367 = vld [vmem:[%s313 + $0x3c] sm:$0xe]
      %v368 = vld [vmem:[%s313 + $0x48] sm:$0xe]
      %v369 = vld [vmem:[%s313 + $0x54] sm:$0xe]
      %v370 = vld [vmem:[%s313 + $0x60] sm:$0xe]
      %v371 = vld [vmem:[%s313 + $0x6c] sm:$0xe]
      %v372 = vld [vmem:[%s313 + $0x78] sm:$0xe]
      %v373 = vld [vmem:[%s313 + $0x84] sm:$0xe]
      %v374 = vld [vmem:[%s313 + $0x90] sm:$0xe]
      %v375 = vld [vmem:[%s313 + $0x9c] sm:$0xe]
      %v376 = vld [vmem:[%s313 + $0xa8] sm:$0xe]
      %v377 = vld [vmem:[%s313 + $0xb4] sm:$0xe]
      %v410 = vunpack.c.l.b16 %v184
      %v411 = vunpack.c.l.b16 %v185
      %v412 = vunpack.c.l.b16 %v186
      %v413 = vunpack.c.l.b16 %v187
      %v414 = vunpack.c.l.b16 %v188
      %v415 = vunpack.c.l.b16 %v189
      %v416 = vunpack.c.l.b16 %v190
      %v417 = vunpack.c.l.b16 %v191
      %v418 = vunpack.c.l.b16 %v192
      %v419 = vunpack.c.l.b16 %v193
      %v420 = vunpack.c.l.b16 %v194
      %v421 = vunpack.c.l.b16 %v195
      %v422 = vunpack.c.l.b16 %v196
      %v423 = vunpack.c.l.b16 %v197
      %v424 = vunpack.c.l.b16 %v198
      %v425 = vunpack.c.l.b16 %v199
      %v426 = vunpack.c.l.b16 %v200
      %v427 = vunpack.c.l.b16 %v201
      %v428 = vunpack.c.l.b16 %v202
      %v429 = vunpack.c.l.b16 %v203
      %v430 = vunpack.c.l.b16 %v204
      %v431 = vunpack.c.l.b16 %v205
      %v432 = vunpack.c.l.b16 %v206
      %v433 = vunpack.c.l.b16 %v207
      %v434 = vunpack.c.l.b16 %v208
      %v435 = vunpack.c.l.b16 %v209
      %v436 = vunpack.c.l.b16 %v210
      %v437 = vunpack.c.l.b16 %v211
      %v438 = vunpack.c.l.b16 %v212
      %v439 = vunpack.c.l.b16 %v213
      %v440 = vunpack.c.l.b16 %v214
      %v441 = vunpack.c.l.b16 %v215
      %v442 = vpack.c.b16 %v411, %v410
      %v443 = vpack.c.b16 %v413, %v412
      %v444 = vpack.c.b16 %v415, %v414
      %v445 = vpack.c.b16 %v417, %v416
      %v446 = vpack.c.b16 %v419, %v418
      %v447 = vpack.c.b16 %v421, %v420
      %v448 = vpack.c.b16 %v423, %v422
      %v449 = vpack.c.b16 %v425, %v424
      %v450 = vpack.c.b16 %v427, %v426
      %v451 = vpack.c.b16 %v429, %v428
      %v452 = vpack.c.b16 %v431, %v430
      %v453 = vpack.c.b16 %v433, %v432
      %v454 = vpack.c.b16 %v435, %v434
      %v455 = vpack.c.b16 %v437, %v436
      %v456 = vpack.c.b16 %v439, %v438
      %v457 = vpack.c.b16 %v441, %v440
      %v474 = vunpack.c.l.b16 %v216
      %v475 = vunpack.c.l.b16 %v217
      %v476 = vunpack.c.l.b16 %v218
      %v477 = vunpack.c.l.b16 %v219
      %v478 = vunpack.c.l.b16 %v220
      %v479 = vunpack.c.l.b16 %v221
      %v480 = vunpack.c.l.b16 %v222
      %v481 = vunpack.c.l.b16 %v223
      %v482 = vunpack.c.l.b16 %v224
      %v483 = vunpack.c.l.b16 %v225
      %v484 = vunpack.c.l.b16 %v226
      %v485 = vunpack.c.l.b16 %v227
      %v486 = vunpack.c.l.b16 %v228
      %v487 = vunpack.c.l.b16 %v229
      %v488 = vunpack.c.l.b16 %v230
      %v489 = vunpack.c.l.b16 %v231
      %v490 = vpack.c.b16 %v474, %v474
      %v491 = vpack.c.b16 %v475, %v475
      %v492 = vpack.c.b16 %v476, %v476
      %v493 = vpack.c.b16 %v477, %v477
      %v494 = vpack.c.b16 %v478, %v478
      %v495 = vpack.c.b16 %v479, %v479
      %v496 = vpack.c.b16 %v480, %v480
      %v497 = vpack.c.b16 %v481, %v481
      %v498 = vpack.c.b16 %v482, %v482
      %v499 = vpack.c.b16 %v483, %v483
      %v500 = vpack.c.b16 %v484, %v484
      %v501 = vpack.c.b16 %v485, %v485
      %v502 = vpack.c.b16 %v486, %v486
      %v503 = vpack.c.b16 %v487, %v487
      %v504 = vpack.c.b16 %v488, %v488
      %v505 = vpack.c.b16 %v489, %v489
      %vm506 = vsmask.f32 7424
      %v508 = vshrl.u32 %v442, 16
      %v510 = vshll.u32 %v442, 16
      %v512 = vrot.slane %v510, 1
      %v513 = vor.u32 %v508, %v512
      %v515 = vshll.u32 %v490, 16
      %v517 = vrot.slane %v515, 1
      %v518 = vsel %vm506, %v513, %v517
      %v520 = vshrl.u32 %v443, 16
      %v522 = vshll.u32 %v443, 16
      %v524 = vrot.slane %v522, 1
      %v525 = vor.u32 %v520, %v524
      %v527 = vshll.u32 %v491, 16
      %v529 = vrot.slane %v527, 1
      %v530 = vsel %vm506, %v525, %v529
      %v532 = vshrl.u32 %v444, 16
      %v534 = vshll.u32 %v444, 16
      %v536 = vrot.slane %v534, 1
      %v537 = vor.u32 %v532, %v536
      %v539 = vshll.u32 %v492, 16
      %v541 = vrot.slane %v539, 1
      %v542 = vsel %vm506, %v537, %v541
      %v544 = vshrl.u32 %v445, 16
      %v546 = vshll.u32 %v445, 16
      %v548 = vrot.slane %v546, 1
      %v549 = vor.u32 %v544, %v548
      %v551 = vshll.u32 %v493, 16
      %v553 = vrot.slane %v551, 1
      %v554 = vsel %vm506, %v549, %v553
      %v556 = vshrl.u32 %v446, 16
      %v558 = vshll.u32 %v446, 16
      %v560 = vrot.slane %v558, 1
      %v561 = vor.u32 %v556, %v560
      %v563 = vshll.u32 %v494, 16
      %v565 = vrot.slane %v563, 1
      %v566 = vsel %vm506, %v561, %v565
      %v568 = vshrl.u32 %v447, 16
      %v570 = vshll.u32 %v447, 16
      %v572 = vrot.slane %v570, 1
      %v573 = vor.u32 %v568, %v572
      %v575 = vshll.u32 %v495, 16
      %v577 = vrot.slane %v575, 1
      %v578 = vsel %vm506, %v573, %v577
      %v580 = vshrl.u32 %v448, 16
      %v582 = vshll.u32 %v448, 16
      %v584 = vrot.slane %v582, 1
      %v585 = vor.u32 %v580, %v584
      %v587 = vshll.u32 %v496, 16
      %v589 = vrot.slane %v587, 1
      %v590 = vsel %vm506, %v585, %v589
      %v592 = vshrl.u32 %v449, 16
      %v594 = vshll.u32 %v449, 16
      %v596 = vrot.slane %v594, 1
      %v597 = vor.u32 %v592, %v596
      %v599 = vshll.u32 %v497, 16
      %v601 = vrot.slane %v599, 1
      %v602 = vsel %vm506, %v597, %v601
      %v604 = vshrl.u32 %v450, 16
      %v606 = vshll.u32 %v450, 16
      %v608 = vrot.slane %v606, 1
      %v609 = vor.u32 %v604, %v608
      %v611 = vshll.u32 %v498, 16
      %v613 = vrot.slane %v611, 1
      %v614 = vsel %vm506, %v609, %v613
      %v616 = vshrl.u32 %v451, 16
      %v618 = vshll.u32 %v451, 16
      %v620 = vrot.slane %v618, 1
      %v621 = vor.u32 %v616, %v620
      %v623 = vshll.u32 %v499, 16
      %v625 = vrot.slane %v623, 1
      %v626 = vsel %vm506, %v621, %v625
      %v628 = vshrl.u32 %v452, 16
      %v630 = vshll.u32 %v452, 16
      %v632 = vrot.slane %v630, 1
      %v633 = vor.u32 %v628, %v632
      %v635 = vshll.u32 %v500, 16
      %v637 = vrot.slane %v635, 1
      %v638 = vsel %vm506, %v633, %v637
      %v640 = vshrl.u32 %v453, 16
      %v642 = vshll.u32 %v453, 16
      %v644 = vrot.slane %v642, 1
      %v645 = vor.u32 %v640, %v644
      %v647 = vshll.u32 %v501, 16
      %v649 = vrot.slane %v647, 1
      %v650 = vsel %vm506, %v645, %v649
      %v652 = vshrl.u32 %v454, 16
      %v654 = vshll.u32 %v454, 16
      %v656 = vrot.slane %v654, 1
      %v657 = vor.u32 %v652, %v656
      %v659 = vshll.u32 %v502, 16
      %v661 = vrot.slane %v659, 1
      %v662 = vsel %vm506, %v657, %v661
      %v664 = vshrl.u32 %v455, 16
      %v666 = vshll.u32 %v455, 16
      %v668 = vrot.slane %v666, 1
      %v669 = vor.u32 %v664, %v668
      %v671 = vshll.u32 %v503, 16
      %v673 = vrot.slane %v671, 1
      %v674 = vsel %vm506, %v669, %v673
      %v676 = vshrl.u32 %v456, 16
      %v678 = vshll.u32 %v456, 16
      %v680 = vrot.slane %v678, 1
      %v681 = vor.u32 %v676, %v680
      %v683 = vshll.u32 %v504, 16
      %v685 = vrot.slane %v683, 1
      %v686 = vsel %vm506, %v681, %v685
      %v688 = vshrl.u32 %v457, 16
      %v690 = vshll.u32 %v457, 16
      %v692 = vrot.slane %v690, 1
      %v693 = vor.u32 %v688, %v692
      %v695 = vshll.u32 %v505, 16
      %v697 = vrot.slane %v695, 1
      %v698 = vsel %vm506, %v693, %v697
      %699 = vrot.lane.b32.xlu0 %v518, 8
      %v700 = vpop.permute.xlu0 %699
      %701 = vrot.lane.b32.xlu0 %v530, 8
      %v702 = vpop.permute.xlu0 %701
      %703 = vrot.lane.b32.xlu0 %v542, 8
      %v704 = vpop.permute.xlu0 %703
      %705 = vrot.lane.b32.xlu0 %v554, 8
      %v706 = vpop.permute.xlu0 %705
      %707 = vrot.lane.b32.xlu0 %v566, 8
      %v708 = vpop.permute.xlu0 %707
      %709 = vrot.lane.b32.xlu0 %v578, 8
      %v710 = vpop.permute.xlu0 %709
      %711 = vrot.lane.b32.xlu0 %v590, 8
      %v712 = vpop.permute.xlu0 %711
      %713 = vrot.lane.b32.xlu0 %v602, 8
      %v714 = vpop.permute.xlu0 %713
      %715 = vrot.lane.b32.xlu0 %v614, 8
      %v716 = vpop.permute.xlu0 %715
      %717 = vrot.lane.b32.xlu0 %v626, 8
      %v718 = vpop.permute.xlu0 %717
      %719 = vrot.lane.b32.xlu0 %v638, 8
      %v720 = vpop.permute.xlu0 %719
      %721 = vrot.lane.b32.xlu0 %v650, 8
      %v722 = vpop.permute.xlu0 %721
      %723 = vrot.lane.b32.xlu0 %v662, 8
      %v724 = vpop.permute.xlu0 %723
      %725 = vrot.lane.b32.xlu0 %v674, 8
      %v726 = vpop.permute.xlu0 %725
      %727 = vrot.lane.b32.xlu0 %v686, 8
      %v728 = vpop.permute.xlu0 %727
      %729 = vrot.lane.b32.xlu0 %v698, 8
      %v730 = vpop.permute.xlu0 %729
      %v747 = vunpack.c.l.b16 %v232
      %v748 = vunpack.c.l.b16 %v233
      %v749 = vunpack.c.l.b16 %v234
      %v750 = vunpack.c.l.b16 %v235
      %v751 = vunpack.c.l.b16 %v236
      %v752 = vunpack.c.l.b16 %v237
      %v753 = vunpack.c.l.b16 %v238
      %v754 = vunpack.c.l.b16 %v239
      %v755 = vunpack.c.l.b16 %v240
      %v756 = vunpack.c.l.b16 %v241
      %v757 = vunpack.c.l.b16 %v242
      %v758 = vunpack.c.l.b16 %v243
      %v759 = vunpack.c.l.b16 %v244
      %v760 = vunpack.c.l.b16 %v245
      %v761 = vunpack.c.l.b16 %v246
      %v762 = vunpack.c.l.b16 %v247
      %v763 = vpack.c.b16 %v411, %v747
      %v764 = vpack.c.b16 %v413, %v748
      %v765 = vpack.c.b16 %v415, %v749
      %v766 = vpack.c.b16 %v417, %v750
      %v767 = vpack.c.b16 %v419, %v751
      %v768 = vpack.c.b16 %v421, %v752
      %v769 = vpack.c.b16 %v423, %v753
      %v770 = vpack.c.b16 %v425, %v754
      %v771 = vpack.c.b16 %v427, %v755
      %v772 = vpack.c.b16 %v429, %v756
      %v773 = vpack.c.b16 %v431, %v757
      %v774 = vpack.c.b16 %v433, %v758
      %v775 = vpack.c.b16 %v435, %v759
      %v776 = vpack.c.b16 %v437, %v760
      %v777 = vpack.c.b16 %v439, %v761
      %v778 = vpack.c.b16 %v441, %v762
      %vm779 = vcmask 1046528
      %v780 = vrot.slane %v763, 1
      %v781 = vrot.slane %v490, 1
      %v782 = vsel %vm779, %v780, %v781
      %v783 = vrot.slane %v764, 1
      %v784 = vrot.slane %v491, 1
      %v785 = vsel %vm779, %v783, %v784
      %v786 = vrot.slane %v765, 1
      %v787 = vrot.slane %v492, 1
      %v788 = vsel %vm779, %v786, %v787
      %v789 = vrot.slane %v766, 1
      %v790 = vrot.slane %v493, 1
      %v791 = vsel %vm779, %v789, %v790
      %v792 = vrot.slane %v767, 1
      %v793 = vrot.slane %v494, 1
      %v794 = vsel %vm779, %v792, %v793
      %v795 = vrot.slane %v768, 1
      %v796 = vrot.slane %v495, 1
      %v797 = vsel %vm779, %v795, %v796
      %v798 = vrot.slane %v769, 1
      %v799 = vrot.slane %v496, 1
      %v800 = vsel %vm779, %v798, %v799
      %v801 = vrot.slane %v770, 1
      %v802 = vrot.slane %v497, 1
      %v803 = vsel %vm779, %v801, %v802
      %v804 = vrot.slane %v771, 1
      %v805 = vrot.slane %v498, 1
      %v806 = vsel %vm779, %v804, %v805
      %v807 = vrot.slane %v772, 1
      %v808 = vrot.slane %v499, 1
      %v809 = vsel %vm779, %v807, %v808
      %v810 = vrot.slane %v773, 1
      %v811 = vrot.slane %v500, 1
      %v812 = vsel %vm779, %v810, %v811
      %v813 = vrot.slane %v774, 1
      %v814 = vrot.slane %v501, 1
      %v815 = vsel %vm779, %v813, %v814
      %v816 = vrot.slane %v775, 1
      %v817 = vrot.slane %v502, 1
      %v818 = vsel %vm779, %v816, %v817
      %v819 = vrot.slane %v776, 1
      %v820 = vrot.slane %v503, 1
      %v821 = vsel %vm779, %v819, %v820
      %v822 = vrot.slane %v777, 1
      %v823 = vrot.slane %v504, 1
      %v824 = vsel %vm779, %v822, %v823
      %v825 = vrot.slane %v778, 1
      %v826 = vrot.slane %v505, 1
      %v827 = vsel %vm779, %v825, %v826
      %828 = vrot.lane.b32.xlu0 %v782, 16
      %v829 = vpop.permute.xlu0 %828
      %830 = vrot.lane.b32.xlu0 %v785, 16
      %v831 = vpop.permute.xlu0 %830
      %832 = vrot.lane.b32.xlu0 %v788, 16
      %v833 = vpop.permute.xlu0 %832
      %834 = vrot.lane.b32.xlu0 %v791, 16
      %v835 = vpop.permute.xlu0 %834
      %836 = vrot.lane.b32.xlu0 %v794, 16
      %v837 = vpop.permute.xlu0 %836
      %838 = vrot.lane.b32.xlu0 %v797, 16
      %v839 = vpop.permute.xlu0 %838
      %840 = vrot.lane.b32.xlu0 %v800, 16
      %v841 = vpop.permute.xlu0 %840
      %842 = vrot.lane.b32.xlu0 %v803, 16
      %v843 = vpop.permute.xlu0 %842
      %844 = vrot.lane.b32.xlu0 %v806, 16
      %v845 = vpop.permute.xlu0 %844
      %846 = vrot.lane.b32.xlu0 %v809, 16
      %v847 = vpop.permute.xlu0 %846
      %848 = vrot.lane.b32.xlu0 %v812, 16
      %v849 = vpop.permute.xlu0 %848
      %850 = vrot.lane.b32.xlu0 %v815, 16
      %v851 = vpop.permute.xlu0 %850
      %852 = vrot.lane.b32.xlu0 %v818, 16
      %v853 = vpop.permute.xlu0 %852
      %854 = vrot.lane.b32.xlu0 %v821, 16
      %v855 = vpop.permute.xlu0 %854
      %856 = vrot.lane.b32.xlu0 %v824, 16
      %v857 = vpop.permute.xlu0 %856
      %858 = vrot.lane.b32.xlu0 %v827, 16
      %v859 = vpop.permute.xlu0 %858
      %v892 = vunpack.c.l.b16 %v249
      %v893 = vunpack.c.l.b16 %v250
      %v894 = vunpack.c.l.b16 %v251
      %v895 = vunpack.c.l.b16 %v252
      %v896 = vunpack.c.l.b16 %v253
      %v897 = vunpack.c.l.b16 %v254
      %v898 = vunpack.c.l.b16 %v255
      %v899 = vunpack.c.l.b16 %v256
      %v900 = vunpack.c.l.b16 %v257
      %v901 = vunpack.c.l.b16 %v258
      %v902 = vunpack.c.l.b16 %v259
      %v903 = vunpack.c.l.b16 %v260
      %v904 = vunpack.c.l.b16 %v261
      %v905 = vunpack.c.l.b16 %v262
      %v906 = vunpack.c.l.b16 %v263
      %v907 = vunpack.c.l.b16 %v264
      %v908 = vunpack.c.l.b16 %v265
      %v909 = vunpack.c.l.b16 %v266
      %v910 = vunpack.c.l.b16 %v267
      %v911 = vunpack.c.l.b16 %v268
      %v912 = vunpack.c.l.b16 %v269
      %v913 = vunpack.c.l.b16 %v270
      %v914 = vunpack.c.l.b16 %v271
      %v915 = vunpack.c.l.b16 %v272
      %v916 = vunpack.c.l.b16 %v273
      %v917 = vunpack.c.l.b16 %v274
      %v918 = vunpack.c.l.b16 %v275
      %v919 = vunpack.c.l.b16 %v276
      %v920 = vunpack.c.l.b16 %v277
      %v921 = vunpack.c.l.b16 %v278
      %v922 = vunpack.c.l.b16 %v279
      %v923 = vunpack.c.l.b16 %v280
      %v924 = vpack.c.b16 %v893, %v892
      %v925 = vpack.c.b16 %v895, %v894
      %v926 = vpack.c.b16 %v897, %v896
      %v927 = vpack.c.b16 %v899, %v898
      %v928 = vpack.c.b16 %v901, %v900
      %v929 = vpack.c.b16 %v903, %v902
      %v930 = vpack.c.b16 %v905, %v904
      %v931 = vpack.c.b16 %v907, %v906
      %v932 = vpack.c.b16 %v909, %v908
      %v933 = vpack.c.b16 %v911, %v910
      %v934 = vpack.c.b16 %v913, %v912
      %v935 = vpack.c.b16 %v915, %v914
      %v936 = vpack.c.b16 %v917, %v916
      %v937 = vpack.c.b16 %v919, %v918
      %v938 = vpack.c.b16 %v921, %v920
      %v939 = vpack.c.b16 %v923, %v922
      %940 = vrot.lane.b32.xlu0 %v924, 24
      %v941 = vpop.permute.xlu0 %940
      %942 = vrot.lane.b32.xlu0 %v925, 24
      %v943 = vpop.permute.xlu0 %942
      %944 = vrot.lane.b32.xlu0 %v926, 24
      %v945 = vpop.permute.xlu0 %944
      %946 = vrot.lane.b32.xlu0 %v927, 24
      %v947 = vpop.permute.xlu0 %946
      %948 = vrot.lane.b32.xlu0 %v928, 24
      %v949 = vpop.permute.xlu0 %948
      %950 = vrot.lane.b32.xlu0 %v929, 24
      %v951 = vpop.permute.xlu0 %950
      %952 = vrot.lane.b32.xlu0 %v930, 24
      %v953 = vpop.permute.xlu0 %952
      %954 = vrot.lane.b32.xlu0 %v931, 24
      %v955 = vpop.permute.xlu0 %954
      %956 = vrot.lane.b32.xlu0 %v932, 24
      %v957 = vpop.permute.xlu0 %956
      %958 = vrot.lane.b32.xlu0 %v933, 24
      %v959 = vpop.permute.xlu0 %958
      %960 = vrot.lane.b32.xlu0 %v934, 24
      %v961 = vpop.permute.xlu0 %960
      %962 = vrot.lane.b32.xlu0 %v935, 24
      %v963 = vpop.permute.xlu0 %962
      %964 = vrot.lane.b32.xlu0 %v936, 24
      %v965 = vpop.permute.xlu0 %964
      %966 = vrot.lane.b32.xlu0 %v937, 24
      %v967 = vpop.permute.xlu0 %966
      %968 = vrot.lane.b32.xlu0 %v938, 24
      %v969 = vpop.permute.xlu0 %968
      %970 = vrot.lane.b32.xlu0 %v939, 24
      %v971 = vpop.permute.xlu0 %970
      %v988 = vunpack.c.l.b16 %v281
      %v989 = vunpack.c.l.b16 %v282
      %v990 = vunpack.c.l.b16 %v283
      %v991 = vunpack.c.l.b16 %v284
      %v992 = vunpack.c.l.b16 %v285
      %v993 = vunpack.c.l.b16 %v286
      %v994 = vunpack.c.l.b16 %v287
      %v995 = vunpack.c.l.b16 %v288
      %v996 = vunpack.c.l.b16 %v289
      %v997 = vunpack.c.l.b16 %v290
      %v998 = vunpack.c.l.b16 %v291
      %v999 = vunpack.c.l.b16 %v292
      %v1000 = vunpack.c.l.b16 %v293
      %v1001 = vunpack.c.l.b16 %v294
      %v1002 = vunpack.c.l.b16 %v295
      %v1003 = vunpack.c.l.b16 %v296
      %v1004 = vpack.c.b16 %v988, %v988
      %v1005 = vpack.c.b16 %v989, %v989
      %v1006 = vpack.c.b16 %v990, %v990
      %v1007 = vpack.c.b16 %v991, %v991
      %v1008 = vpack.c.b16 %v992, %v992
      %v1009 = vpack.c.b16 %v993, %v993
      %v1010 = vpack.c.b16 %v994, %v994
      %v1011 = vpack.c.b16 %v995, %v995
      %v1012 = vpack.c.b16 %v996, %v996
      %v1013 = vpack.c.b16 %v997, %v997
      %v1014 = vpack.c.b16 %v998, %v998
      %v1015 = vpack.c.b16 %v999, %v999
      %v1016 = vpack.c.b16 %v1000, %v1000
      %v1017 = vpack.c.b16 %v1001, %v1001
      %v1018 = vpack.c.b16 %v1002, %v1002
      %v1019 = vpack.c.b16 %v1003, %v1003
      %v1021 = vshrl.u32 %v924, 16
      %v1023 = vshll.u32 %v924, 16
      %v1025 = vrot.slane %v1023, 1
      %v1026 = vor.u32 %v1021, %v1025
      %v1028 = vshll.u32 %v1004, 16
      %v1030 = vrot.slane %v1028, 1
      %v1031 = vsel %vm506, %v1026, %v1030
      %v1033 = vshrl.u32 %v925, 16
      %v1035 = vshll.u32 %v925, 16
      %v1037 = vrot.slane %v1035, 1
      %v1038 = vor.u32 %v1033, %v1037
      %v1040 = vshll.u32 %v1005, 16
      %v1042 = vrot.slane %v1040, 1
      %v1043 = vsel %vm506, %v1038, %v1042
      %v1045 = vshrl.u32 %v926, 16
      %v1047 = vshll.u32 %v926, 16
      %v1049 = vrot.slane %v1047, 1
      %v1050 = vor.u32 %v1045, %v1049
      %v1052 = vshll.u32 %v1006, 16
      %v1054 = vrot.slane %v1052, 1
      %v1055 = vsel %vm506, %v1050, %v1054
      %v1057 = vshrl.u32 %v927, 16
      %v1059 = vshll.u32 %v927, 16
      %v1061 = vrot.slane %v1059, 1
      %v1062 = vor.u32 %v1057, %v1061
      %v1064 = vshll.u32 %v1007, 16
      %v1066 = vrot.slane %v1064, 1
      %v1067 = vsel %vm506, %v1062, %v1066
      %v1069 = vshrl.u32 %v928, 16
      %v1071 = vshll.u32 %v928, 16
      %v1073 = vrot.slane %v1071, 1
      %v1074 = vor.u32 %v1069, %v1073
      %v1076 = vshll.u32 %v1008, 16
      %v1078 = vrot.slane %v1076, 1
      %v1079 = vsel %vm506, %v1074, %v1078
      %v1081 = vshrl.u32 %v929, 16
      %v1083 = vshll.u32 %v929, 16
      %v1085 = vrot.slane %v1083, 1
      %v1086 = vor.u32 %v1081, %v1085
      %v1088 = vshll.u32 %v1009, 16
      %v1090 = vrot.slane %v1088, 1
      %v1091 = vsel %vm506, %v1086, %v1090
      %v1093 = vshrl.u32 %v930, 16
      %v1095 = vshll.u32 %v930, 16
      %v1097 = vrot.slane %v1095, 1
      %v1098 = vor.u32 %v1093, %v1097
      %v1100 = vshll.u32 %v1010, 16
      %v1102 = vrot.slane %v1100, 1
      %v1103 = vsel %vm506, %v1098, %v1102
      %v1105 = vshrl.u32 %v931, 16
      %v1107 = vshll.u32 %v931, 16
      %v1109 = vrot.slane %v1107, 1
      %v1110 = vor.u32 %v1105, %v1109
      %v1112 = vshll.u32 %v1011, 16
      %v1114 = vrot.slane %v1112, 1
      %v1115 = vsel %vm506, %v1110, %v1114
      %v1117 = vshrl.u32 %v932, 16
      %v1119 = vshll.u32 %v932, 16
      %v1121 = vrot.slane %v1119, 1
      %v1122 = vor.u32 %v1117, %v1121
      %v1124 = vshll.u32 %v1012, 16
      %v1126 = vrot.slane %v1124, 1
      %v1127 = vsel %vm506, %v1122, %v1126
      %v1129 = vshrl.u32 %v933, 16
      %v1131 = vshll.u32 %v933, 16
      %v1133 = vrot.slane %v1131, 1
      %v1134 = vor.u32 %v1129, %v1133
      %v1136 = vshll.u32 %v1013, 16
      %v1138 = vrot.slane %v1136, 1
      %v1139 = vsel %vm506, %v1134, %v1138
      %v1141 = vshrl.u32 %v934, 16
      %v1143 = vshll.u32 %v934, 16
      %v1145 = vrot.slane %v1143, 1
      %v1146 = vor.u32 %v1141, %v1145
      %v1148 = vshll.u32 %v1014, 16
      %v1150 = vrot.slane %v1148, 1
      %v1151 = vsel %vm506, %v1146, %v1150
      %v1153 = vshrl.u32 %v935, 16
      %v1155 = vshll.u32 %v935, 16
      %v1157 = vrot.slane %v1155, 1
      %v1158 = vor.u32 %v1153, %v1157
      %v1160 = vshll.u32 %v1015, 16
      %v1162 = vrot.slane %v1160, 1
      %v1163 = vsel %vm506, %v1158, %v1162
      %v1165 = vshrl.u32 %v936, 16
      %v1167 = vshll.u32 %v936, 16
      %v1169 = vrot.slane %v1167, 1
      %v1170 = vor.u32 %v1165, %v1169
      %v1172 = vshll.u32 %v1016, 16
      %v1174 = vrot.slane %v1172, 1
      %v1175 = vsel %vm506, %v1170, %v1174
      %v1177 = vshrl.u32 %v937, 16
      %v1179 = vshll.u32 %v937, 16
      %v1181 = vrot.slane %v1179, 1
      %v1182 = vor.u32 %v1177, %v1181
      %v1184 = vshll.u32 %v1017, 16
      %v1186 = vrot.slane %v1184, 1
      %v1187 = vsel %vm506, %v1182, %v1186
      %v1189 = vshrl.u32 %v938, 16
      %v1191 = vshll.u32 %v938, 16
      %v1193 = vrot.slane %v1191, 1
      %v1194 = vor.u32 %v1189, %v1193
      %v1196 = vshll.u32 %v1018, 16
      %v1198 = vrot.slane %v1196, 1
      %v1199 = vsel %vm506, %v1194, %v1198
      %v1201 = vshrl.u32 %v939, 16
      %v1203 = vshll.u32 %v939, 16
      %v1205 = vrot.slane %v1203, 1
      %v1206 = vor.u32 %v1201, %v1205
      %v1208 = vshll.u32 %v1019, 16
      %v1210 = vrot.slane %v1208, 1
      %v1211 = vsel %vm506, %v1206, %v1210
      %1212 = vrot.lane.b32.xlu0 %v1031, 32
      %v1213 = vpop.permute.xlu0 %1212
      %1214 = vrot.lane.b32.xlu0 %v1043, 32
      %v1215 = vpop.permute.xlu0 %1214
      %1216 = vrot.lane.b32.xlu0 %v1055, 32
      %v1217 = vpop.permute.xlu0 %1216
      %1218 = vrot.lane.b32.xlu0 %v1067, 32
      %v1219 = vpop.permute.xlu0 %1218
      %1220 = vrot.lane.b32.xlu0 %v1079, 32
      %v1221 = vpop.permute.xlu0 %1220
      %1222 = vrot.lane.b32.xlu0 %v1091, 32
      %v1223 = vpop.permute.xlu0 %1222
      %1224 = vrot.lane.b32.xlu0 %v1103, 32
      %v1225 = vpop.permute.xlu0 %1224
      %1226 = vrot.lane.b32.xlu0 %v1115, 32
      %v1227 = vpop.permute.xlu0 %1226
      %1228 = vrot.lane.b32.xlu0 %v1127, 32
      %v1229 = vpop.permute.xlu0 %1228
      %1230 = vrot.lane.b32.xlu0 %v1139, 32
      %v1231 = vpop.permute.xlu0 %1230
      %1232 = vrot.lane.b32.xlu0 %v1151, 32
      %v1233 = vpop.permute.xlu0 %1232
      %1234 = vrot.lane.b32.xlu0 %v1163, 32
      %v1235 = vpop.permute.xlu0 %1234
      %1236 = vrot.lane.b32.xlu0 %v1175, 32
      %v1237 = vpop.permute.xlu0 %1236
      %1238 = vrot.lane.b32.xlu0 %v1187, 32
      %v1239 = vpop.permute.xlu0 %1238
      %1240 = vrot.lane.b32.xlu0 %v1199, 32
      %v1241 = vpop.permute.xlu0 %1240
      %1242 = vrot.lane.b32.xlu0 %v1211, 32
      %v1243 = vpop.permute.xlu0 %1242
      %v1260 = vunpack.c.l.b16 %v297
      %v1261 = vunpack.c.l.b16 %v298
      %v1262 = vunpack.c.l.b16 %v299
      %v1263 = vunpack.c.l.b16 %v300
      %v1264 = vunpack.c.l.b16 %v301
      %v1265 = vunpack.c.l.b16 %v302
      %v1266 = vunpack.c.l.b16 %v303
      %v1267 = vunpack.c.l.b16 %v304
      %v1268 = vunpack.c.l.b16 %v305
      %v1269 = vunpack.c.l.b16 %v306
      %v1270 = vunpack.c.l.b16 %v307
      %v1271 = vunpack.c.l.b16 %v308
      %v1272 = vunpack.c.l.b16 %v309
      %v1273 = vunpack.c.l.b16 %v310
      %v1274 = vunpack.c.l.b16 %v311
      %v1275 = vunpack.c.l.b16 %v312
      %v1276 = vpack.c.b16 %v893, %v1260
      %v1277 = vpack.c.b16 %v895, %v1261
      %v1278 = vpack.c.b16 %v897, %v1262
      %v1279 = vpack.c.b16 %v899, %v1263
      %v1280 = vpack.c.b16 %v901, %v1264
      %v1281 = vpack.c.b16 %v903, %v1265
      %v1282 = vpack.c.b16 %v905, %v1266
      %v1283 = vpack.c.b16 %v907, %v1267
      %v1284 = vpack.c.b16 %v909, %v1268
      %v1285 = vpack.c.b16 %v911, %v1269
      %v1286 = vpack.c.b16 %v913, %v1270
      %v1287 = vpack.c.b16 %v915, %v1271
      %v1288 = vpack.c.b16 %v917, %v1272
      %v1289 = vpack.c.b16 %v919, %v1273
      %v1290 = vpack.c.b16 %v921, %v1274
      %v1291 = vpack.c.b16 %v923, %v1275
      %v1292 = vrot.slane %v1276, 1
      %v1293 = vrot.slane %v1004, 1
      %v1294 = vsel %vm779, %v1292, %v1293
      %v1295 = vrot.slane %v1277, 1
      %v1296 = vrot.slane %v1005, 1
      %v1297 = vsel %vm779, %v1295, %v1296
      %v1298 = vrot.slane %v1278, 1
      %v1299 = vrot.slane %v1006, 1
      %v1300 = vsel %vm779, %v1298, %v1299
      %v1301 = vrot.slane %v1279, 1
      %v1302 = vrot.slane %v1007, 1
      %v1303 = vsel %vm779, %v1301, %v1302
      %v1304 = vrot.slane %v1280, 1
      %v1305 = vrot.slane %v1008, 1
      %v1306 = vsel %vm779, %v1304, %v1305
      %v1307 = vrot.slane %v1281, 1
      %v1308 = vrot.slane %v1009, 1
      %v1309 = vsel %vm779, %v1307, %v1308
      %v1310 = vrot.slane %v1282, 1
      %v1311 = vrot.slane %v1010, 1
      %v1312 = vsel %vm779, %v1310, %v1311
      %v1313 = vrot.slane %v1283, 1
      %v1314 = vrot.slane %v1011, 1
      %v1315 = vsel %vm779, %v1313, %v1314
      %v1316 = vrot.slane %v1284, 1
      %v1317 = vrot.slane %v1012, 1
      %v1318 = vsel %vm779, %v1316, %v1317
      %v1319 = vrot.slane %v1285, 1
      %v1320 = vrot.slane %v1013, 1
      %v1321 = vsel %vm779, %v1319, %v1320
      %v1322 = vrot.slane %v1286, 1
      %v1323 = vrot.slane %v1014, 1
      %v1324 = vsel %vm779, %v1322, %v1323
      %v1325 = vrot.slane %v1287, 1
      %v1326 = vrot.slane %v1015, 1
      %v1327 = vsel %vm779, %v1325, %v1326
      %v1328 = vrot.slane %v1288, 1
      %v1329 = vrot.slane %v1016, 1
      %v1330 = vsel %vm779, %v1328, %v1329
      %v1331 = vrot.slane %v1289, 1
      %v1332 = vrot.slane %v1017, 1
      %v1333 = vsel %vm779, %v1331, %v1332
      %v1334 = vrot.slane %v1290, 1
      %v1335 = vrot.slane %v1018, 1
      %v1336 = vsel %vm779, %v1334, %v1335
      %v1337 = vrot.slane %v1291, 1
      %v1338 = vrot.slane %v1019, 1
      %v1339 = vsel %vm779, %v1337, %v1338
      %1340 = vrot.lane.b32.xlu0 %v1294, 40
      %v1341 = vpop.permute.xlu0 %1340
      %1342 = vrot.lane.b32.xlu0 %v1297, 40
      %v1343 = vpop.permute.xlu0 %1342
      %1344 = vrot.lane.b32.xlu0 %v1300, 40
      %v1345 = vpop.permute.xlu0 %1344
      %1346 = vrot.lane.b32.xlu0 %v1303, 40
      %v1347 = vpop.permute.xlu0 %1346
      %1348 = vrot.lane.b32.xlu0 %v1306, 40
      %v1349 = vpop.permute.xlu0 %1348
      %1350 = vrot.lane.b32.xlu0 %v1309, 40
      %v1351 = vpop.permute.xlu0 %1350
      %1352 = vrot.lane.b32.xlu0 %v1312, 40
      %v1353 = vpop.permute.xlu0 %1352
      %1354 = vrot.lane.b32.xlu0 %v1315, 40
      %v1355 = vpop.permute.xlu0 %1354
      %1356 = vrot.lane.b32.xlu0 %v1318, 40
      %v1357 = vpop.permute.xlu0 %1356
      %1358 = vrot.lane.b32.xlu0 %v1321, 40
      %v1359 = vpop.permute.xlu0 %1358
      %1360 = vrot.lane.b32.xlu0 %v1324, 40
      %v1361 = vpop.permute.xlu0 %1360
      %1362 = vrot.lane.b32.xlu0 %v1327, 40
      %v1363 = vpop.permute.xlu0 %1362
      %1364 = vrot.lane.b32.xlu0 %v1330, 40
      %v1365 = vpop.permute.xlu0 %1364
      %1366 = vrot.lane.b32.xlu0 %v1333, 40
      %v1367 = vpop.permute.xlu0 %1366
      %1368 = vrot.lane.b32.xlu0 %v1336, 40
      %v1369 = vpop.permute.xlu0 %1368
      %1370 = vrot.lane.b32.xlu0 %v1339, 40
      %v1371 = vpop.permute.xlu0 %1370
      %v1404 = vunpack.c.l.b16 %v314
      %v1405 = vunpack.c.l.b16 %v315
      %v1406 = vunpack.c.l.b16 %v316
      %v1407 = vunpack.c.l.b16 %v317
      %v1408 = vunpack.c.l.b16 %v318
      %v1409 = vunpack.c.l.b16 %v319
      %v1410 = vunpack.c.l.b16 %v320
      %v1411 = vunpack.c.l.b16 %v321
      %v1412 = vunpack.c.l.b16 %v322
      %v1413 = vunpack.c.l.b16 %v323
      %v1414 = vunpack.c.l.b16 %v324
      %v1415 = vunpack.c.l.b16 %v325
      %v1416 = vunpack.c.l.b16 %v326
      %v1417 = vunpack.c.l.b16 %v327
      %v1418 = vunpack.c.l.b16 %v328
      %v1419 = vunpack.c.l.b16 %v329
      %v1420 = vunpack.c.l.b16 %v330
      %v1421 = vunpack.c.l.b16 %v331
      %v1422 = vunpack.c.l.b16 %v332
      %v1423 = vunpack.c.l.b16 %v333
      %v1424 = vunpack.c.l.b16 %v334
      %v1425 = vunpack.c.l.b16 %v335
      %v1426 = vunpack.c.l.b16 %v336
      %v1427 = vunpack.c.l.b16 %v337
      %v1428 = vunpack.c.l.b16 %v338
      %v1429 = vunpack.c.l.b16 %v339
      %v1430 = vunpack.c.l.b16 %v340
      %v1431 = vunpack.c.l.b16 %v341
      %v1432 = vunpack.c.l.b16 %v342
      %v1433 = vunpack.c.l.b16 %v343
      %v1434 = vunpack.c.l.b16 %v344
      %v1435 = vunpack.c.l.b16 %v345
      %v1436 = vpack.c.b16 %v1405, %v1404
      %v1437 = vpack.c.b16 %v1407, %v1406
      %v1438 = vpack.c.b16 %v1409, %v1408
      %v1439 = vpack.c.b16 %v1411, %v1410
      %v1440 = vpack.c.b16 %v1413, %v1412
      %v1441 = vpack.c.b16 %v1415, %v1414
      %v1442 = vpack.c.b16 %v1417, %v1416
      %v1443 = vpack.c.b16 %v1419, %v1418
      %v1444 = vpack.c.b16 %v1421, %v1420
      %v1445 = vpack.c.b16 %v1423, %v1422
      %v1446 = vpack.c.b16 %v1425, %v1424
      %v1447 = vpack.c.b16 %v1427, %v1426
      %v1448 = vpack.c.b16 %v1429, %v1428
      %v1449 = vpack.c.b16 %v1431, %v1430
      %v1450 = vpack.c.b16 %v1433, %v1432
      %v1451 = vpack.c.b16 %v1435, %v1434
      %1452 = vrot.lane.b32.xlu0 %v1436, 48
      %v1453 = vpop.permute.xlu0 %1452
      %1454 = vrot.lane.b32.xlu0 %v1437, 48
      %v1455 = vpop.permute.xlu0 %1454
      %1456 = vrot.lane.b32.xlu0 %v1438, 48
      %v1457 = vpop.permute.xlu0 %1456
      %1458 = vrot.lane.b32.xlu0 %v1439, 48
      %v1459 = vpop.permute.xlu0 %1458
      %1460 = vrot.lane.b32.xlu0 %v1440, 48
      %v1461 = vpop.permute.xlu0 %1460
      %1462 = vrot.lane.b32.xlu0 %v1441, 48
      %v1463 = vpop.permute.xlu0 %1462
      %1464 = vrot.lane.b32.xlu0 %v1442, 48
      %v1465 = vpop.permute.xlu0 %1464
      %1466 = vrot.lane.b32.xlu0 %v1443, 48
      %v1467 = vpop.permute.xlu0 %1466
      %1468 = vrot.lane.b32.xlu0 %v1444, 48
      %v1469 = vpop.permute.xlu0 %1468
      %1470 = vrot.lane.b32.xlu0 %v1445, 48
      %v1471 = vpop.permute.xlu0 %1470
      %1472 = vrot.lane.b32.xlu0 %v1446, 48
      %v1473 = vpop.permute.xlu0 %1472
      %1474 = vrot.lane.b32.xlu0 %v1447, 48
      %v1475 = vpop.permute.xlu0 %1474
      %1476 = vrot.lane.b32.xlu0 %v1448, 48
      %v1477 = vpop.permute.xlu0 %1476
      %1478 = vrot.lane.b32.xlu0 %v1449, 48
      %v1479 = vpop.permute.xlu0 %1478
      %1480 = vrot.lane.b32.xlu0 %v1450, 48
      %v1481 = vpop.permute.xlu0 %1480
      %1482 = vrot.lane.b32.xlu0 %v1451, 48
      %v1483 = vpop.permute.xlu0 %1482
      %v1500 = vunpack.c.l.b16 %v346
      %v1501 = vunpack.c.l.b16 %v347
      %v1502 = vunpack.c.l.b16 %v348
      %v1503 = vunpack.c.l.b16 %v349
      %v1504 = vunpack.c.l.b16 %v350
      %v1505 = vunpack.c.l.b16 %v351
      %v1506 = vunpack.c.l.b16 %v352
      %v1507 = vunpack.c.l.b16 %v353
      %v1508 = vunpack.c.l.b16 %v354
      %v1509 = vunpack.c.l.b16 %v355
      %v1510 = vunpack.c.l.b16 %v356
      %v1511 = vunpack.c.l.b16 %v357
      %v1512 = vunpack.c.l.b16 %v358
      %v1513 = vunpack.c.l.b16 %v359
      %v1514 = vunpack.c.l.b16 %v360
      %v1515 = vunpack.c.l.b16 %v361
      %v1516 = vpack.c.b16 %v1500, %v1500
      %v1517 = vpack.c.b16 %v1501, %v1501
      %v1518 = vpack.c.b16 %v1502, %v1502
      %v1519 = vpack.c.b16 %v1503, %v1503
      %v1520 = vpack.c.b16 %v1504, %v1504
      %v1521 = vpack.c.b16 %v1505, %v1505
      %v1522 = vpack.c.b16 %v1506, %v1506
      %v1523 = vpack.c.b16 %v1507, %v1507
      %v1524 = vpack.c.b16 %v1508, %v1508
      %v1525 = vpack.c.b16 %v1509, %v1509
      %v1526 = vpack.c.b16 %v1510, %v1510
      %v1527 = vpack.c.b16 %v1511, %v1511
      %v1528 = vpack.c.b16 %v1512, %v1512
      %v1529 = vpack.c.b16 %v1513, %v1513
      %v1530 = vpack.c.b16 %v1514, %v1514
      %v1531 = vpack.c.b16 %v1515, %v1515
      %v1533 = vshrl.u32 %v1436, 16
      %v1535 = vshll.u32 %v1436, 16
      %v1537 = vrot.slane %v1535, 1
      %v1538 = vor.u32 %v1533, %v1537
      %v1540 = vshll.u32 %v1516, 16
      %v1542 = vrot.slane %v1540, 1
      %v1543 = vsel %vm506, %v1538, %v1542
      %v1545 = vshrl.u32 %v1437, 16
      %v1547 = vshll.u32 %v1437, 16
      %v1549 = vrot.slane %v1547, 1
      %v1550 = vor.u32 %v1545, %v1549
      %v1552 = vshll.u32 %v1517, 16
      %v1554 = vrot.slane %v1552, 1
      %v1555 = vsel %vm506, %v1550, %v1554
      %v1557 = vshrl.u32 %v1438, 16
      %v1559 = vshll.u32 %v1438, 16
      %v1561 = vrot.slane %v1559, 1
      %v1562 = vor.u32 %v1557, %v1561
      %v1564 = vshll.u32 %v1518, 16
      %v1566 = vrot.slane %v1564, 1
      %v1567 = vsel %vm506, %v1562, %v1566
      %v1569 = vshrl.u32 %v1439, 16
      %v1571 = vshll.u32 %v1439, 16
      %v1573 = vrot.slane %v1571, 1
      %v1574 = vor.u32 %v1569, %v1573
      %v1576 = vshll.u32 %v1519, 16
      %v1578 = vrot.slane %v1576, 1
      %v1579 = vsel %vm506, %v1574, %v1578
      %v1581 = vshrl.u32 %v1440, 16
      %v1583 = vshll.u32 %v1440, 16
      %v1585 = vrot.slane %v1583, 1
      %v1586 = vor.u32 %v1581, %v1585
      %v1588 = vshll.u32 %v1520, 16
      %v1590 = vrot.slane %v1588, 1
      %v1591 = vsel %vm506, %v1586, %v1590
      %v1593 = vshrl.u32 %v1441, 16
      %v1595 = vshll.u32 %v1441, 16
      %v1597 = vrot.slane %v1595, 1
      %v1598 = vor.u32 %v1593, %v1597
      %v1600 = vshll.u32 %v1521, 16
      %v1602 = vrot.slane %v1600, 1
      %v1603 = vsel %vm506, %v1598, %v1602
      %v1605 = vshrl.u32 %v1442, 16
      %v1607 = vshll.u32 %v1442, 16
      %v1609 = vrot.slane %v1607, 1
      %v1610 = vor.u32 %v1605, %v1609
      %v1612 = vshll.u32 %v1522, 16
      %v1614 = vrot.slane %v1612, 1
      %v1615 = vsel %vm506, %v1610, %v1614
      %v1617 = vshrl.u32 %v1443, 16
      %v1619 = vshll.u32 %v1443, 16
      %v1621 = vrot.slane %v1619, 1
      %v1622 = vor.u32 %v1617, %v1621
      %v1624 = vshll.u32 %v1523, 16
      %v1626 = vrot.slane %v1624, 1
      %v1627 = vsel %vm506, %v1622, %v1626
      %v1629 = vshrl.u32 %v1444, 16
      %v1631 = vshll.u32 %v1444, 16
      %v1633 = vrot.slane %v1631, 1
      %v1634 = vor.u32 %v1629, %v1633
      %v1636 = vshll.u32 %v1524, 16
      %v1638 = vrot.slane %v1636, 1
      %v1639 = vsel %vm506, %v1634, %v1638
      %v1641 = vshrl.u32 %v1445, 16
      %v1643 = vshll.u32 %v1445, 16
      %v1645 = vrot.slane %v1643, 1
      %v1646 = vor.u32 %v1641, %v1645
      %v1648 = vshll.u32 %v1525, 16
      %v1650 = vrot.slane %v1648, 1
      %v1651 = vsel %vm506, %v1646, %v1650
      %v1653 = vshrl.u32 %v1446, 16
      %v1655 = vshll.u32 %v1446, 16
      %v1657 = vrot.slane %v1655, 1
      %v1658 = vor.u32 %v1653, %v1657
      %v1660 = vshll.u32 %v1526, 16
      %v1662 = vrot.slane %v1660, 1
      %v1663 = vsel %vm506, %v1658, %v1662
      %v1665 = vshrl.u32 %v1447, 16
      %v1667 = vshll.u32 %v1447, 16
      %v1669 = vrot.slane %v1667, 1
      %v1670 = vor.u32 %v1665, %v1669
      %v1672 = vshll.u32 %v1527, 16
      %v1674 = vrot.slane %v1672, 1
      %v1675 = vsel %vm506, %v1670, %v1674
      %v1677 = vshrl.u32 %v1448, 16
      %v1679 = vshll.u32 %v1448, 16
      %v1681 = vrot.slane %v1679, 1
      %v1682 = vor.u32 %v1677, %v1681
      %v1684 = vshll.u32 %v1528, 16
      %v1686 = vrot.slane %v1684, 1
      %v1687 = vsel %vm506, %v1682, %v1686
      %v1689 = vshrl.u32 %v1449, 16
      %v1691 = vshll.u32 %v1449, 16
      %v1693 = vrot.slane %v1691, 1
      %v1694 = vor.u32 %v1689, %v1693
      %v1696 = vshll.u32 %v1529, 16
      %v1698 = vrot.slane %v1696, 1
      %v1699 = vsel %vm506, %v1694, %v1698
      %v1701 = vshrl.u32 %v1450, 16
      %v1703 = vshll.u32 %v1450, 16
      %v1705 = vrot.slane %v1703, 1
      %v1706 = vor.u32 %v1701, %v1705
      %v1708 = vshll.u32 %v1530, 16
      %v1710 = vrot.slane %v1708, 1
      %v1711 = vsel %vm506, %v1706, %v1710
      %v1713 = vshrl.u32 %v1451, 16
      %v1715 = vshll.u32 %v1451, 16
      %v1717 = vrot.slane %v1715, 1
      %v1718 = vor.u32 %v1713, %v1717
      %v1720 = vshll.u32 %v1531, 16
      %v1722 = vrot.slane %v1720, 1
      %v1723 = vsel %vm506, %v1718, %v1722
      %1724 = vrot.lane.b32.xlu0 %v1543, 56
      %v1725 = vpop.permute.xlu0 %1724
      %1726 = vrot.lane.b32.xlu0 %v1555, 56
      %v1727 = vpop.permute.xlu0 %1726
      %1728 = vrot.lane.b32.xlu0 %v1567, 56
      %v1729 = vpop.permute.xlu0 %1728
      %1730 = vrot.lane.b32.xlu0 %v1579, 56
      %v1731 = vpop.permute.xlu0 %1730
      %1732 = vrot.lane.b32.xlu0 %v1591, 56
      %v1733 = vpop.permute.xlu0 %1732
      %1734 = vrot.lane.b32.xlu0 %v1603, 56
      %v1735 = vpop.permute.xlu0 %1734
      %1736 = vrot.lane.b32.xlu0 %v1615, 56
      %v1737 = vpop.permute.xlu0 %1736
      %1738 = vrot.lane.b32.xlu0 %v1627, 56
      %v1739 = vpop.permute.xlu0 %1738
      %1740 = vrot.lane.b32.xlu0 %v1639, 56
      %v1741 = vpop.permute.xlu0 %1740
      %1742 = vrot.lane.b32.xlu0 %v1651, 56
      %v1743 = vpop.permute.xlu0 %1742
      %1744 = vrot.lane.b32.xlu0 %v1663, 56
      %v1745 = vpop.permute.xlu0 %1744
      %1746 = vrot.lane.b32.xlu0 %v1675, 56
      %v1747 = vpop.permute.xlu0 %1746
      %1748 = vrot.lane.b32.xlu0 %v1687, 56
      %v1749 = vpop.permute.xlu0 %1748
      %1750 = vrot.lane.b32.xlu0 %v1699, 56
      %v1751 = vpop.permute.xlu0 %1750
      %1752 = vrot.lane.b32.xlu0 %v1711, 56
      %v1753 = vpop.permute.xlu0 %1752
      %1754 = vrot.lane.b32.xlu0 %v1723, 56
      %v1755 = vpop.permute.xlu0 %1754
      %v1772 = vunpack.c.l.b16 %v362
      %v1773 = vunpack.c.l.b16 %v363
      %v1774 = vunpack.c.l.b16 %v364
      %v1775 = vunpack.c.l.b16 %v365
      %v1776 = vunpack.c.l.b16 %v366
      %v1777 = vunpack.c.l.b16 %v367
      %v1778 = vunpack.c.l.b16 %v368
      %v1779 = vunpack.c.l.b16 %v369
      %v1780 = vunpack.c.l.b16 %v370
      %v1781 = vunpack.c.l.b16 %v371
      %v1782 = vunpack.c.l.b16 %v372
      %v1783 = vunpack.c.l.b16 %v373
      %v1784 = vunpack.c.l.b16 %v374
      %v1785 = vunpack.c.l.b16 %v375
      %v1786 = vunpack.c.l.b16 %v376
      %v1787 = vunpack.c.l.b16 %v377
      %v1788 = vpack.c.b16 %v1405, %v1772
      %v1789 = vpack.c.b16 %v1407, %v1773
      %v1790 = vpack.c.b16 %v1409, %v1774
      %v1791 = vpack.c.b16 %v1411, %v1775
      %v1792 = vpack.c.b16 %v1413, %v1776
      %v1793 = vpack.c.b16 %v1415, %v1777
      %v1794 = vpack.c.b16 %v1417, %v1778
      %v1795 = vpack.c.b16 %v1419, %v1779
      %v1796 = vpack.c.b16 %v1421, %v1780
      %v1797 = vpack.c.b16 %v1423, %v1781
      %v1798 = vpack.c.b16 %v1425, %v1782
      %v1799 = vpack.c.b16 %v1427, %v1783
      %v1800 = vpack.c.b16 %v1429, %v1784
      %v1801 = vpack.c.b16 %v1431, %v1785
      %v1802 = vpack.c.b16 %v1433, %v1786
      %v1803 = vpack.c.b16 %v1435, %v1787
      %v1804 = vrot.slane %v1788, 1
      %v1805 = vrot.slane %v1516, 1
      %v1806 = vsel %vm779, %v1804, %v1805
      %v1807 = vrot.slane %v1789, 1
      %v1808 = vrot.slane %v1517, 1
      %v1809 = vsel %vm779, %v1807, %v1808
      %v1810 = vrot.slane %v1790, 1
      %v1811 = vrot.slane %v1518, 1
      %v1812 = vsel %vm779, %v1810, %v1811
      %v1813 = vrot.slane %v1791, 1
      %v1814 = vrot.slane %v1519, 1
      %v1815 = vsel %vm779, %v1813, %v1814
      %v1816 = vrot.slane %v1792, 1
      %v1817 = vrot.slane %v1520, 1
      %v1818 = vsel %vm779, %v1816, %v1817
      %v1819 = vrot.slane %v1793, 1
      %v1820 = vrot.slane %v1521, 1
      %v1821 = vsel %vm779, %v1819, %v1820
      %v1822 = vrot.slane %v1794, 1
      %v1823 = vrot.slane %v1522, 1
      %v1824 = vsel %vm779, %v1822, %v1823
      %v1825 = vrot.slane %v1795, 1
      %v1826 = vrot.slane %v1523, 1
      %v1827 = vsel %vm779, %v1825, %v1826
      %v1828 = vrot.slane %v1796, 1
      %v1829 = vrot.slane %v1524, 1
      %v1830 = vsel %vm779, %v1828, %v1829
      %v1831 = vrot.slane %v1797, 1
      %v1832 = vrot.slane %v1525, 1
      %v1833 = vsel %vm779, %v1831, %v1832
      %v1834 = vrot.slane %v1798, 1
      %v1835 = vrot.slane %v1526, 1
      %v1836 = vsel %vm779, %v1834, %v1835
      %v1837 = vrot.slane %v1799, 1
      %v1838 = vrot.slane %v1527, 1
      %v1839 = vsel %vm779, %v1837, %v1838
      %v1840 = vrot.slane %v1800, 1
      %v1841 = vrot.slane %v1528, 1
      %v1842 = vsel %vm779, %v1840, %v1841
      %v1843 = vrot.slane %v1801, 1
      %v1844 = vrot.slane %v1529, 1
      %v1845 = vsel %vm779, %v1843, %v1844
      %v1846 = vrot.slane %v1802, 1
      %v1847 = vrot.slane %v1530, 1
      %v1848 = vsel %vm779, %v1846, %v1847
      %v1849 = vrot.slane %v1803, 1
      %v1850 = vrot.slane %v1531, 1
      %v1851 = vsel %vm779, %v1849, %v1850
      %1852 = vrot.lane.b32.xlu0 %v1806, 64
      %v1853 = vpop.permute.xlu0 %1852
      %1854 = vrot.lane.b32.xlu0 %v1809, 64
      %v1855 = vpop.permute.xlu0 %1854
      %1856 = vrot.lane.b32.xlu0 %v1812, 64
      %v1857 = vpop.permute.xlu0 %1856
      %1858 = vrot.lane.b32.xlu0 %v1815, 64
      %v1859 = vpop.permute.xlu0 %1858
      %1860 = vrot.lane.b32.xlu0 %v1818, 64
      %v1861 = vpop.permute.xlu0 %1860
      %1862 = vrot.lane.b32.xlu0 %v1821, 64
      %v1863 = vpop.permute.xlu0 %1862
      %1864 = vrot.lane.b32.xlu0 %v1824, 64
      %v1865 = vpop.permute.xlu0 %1864
      %1866 = vrot.lane.b32.xlu0 %v1827, 64
      %v1867 = vpop.permute.xlu0 %1866
      %1868 = vrot.lane.b32.xlu0 %v1830, 64
      %v1869 = vpop.permute.xlu0 %1868
      %1870 = vrot.lane.b32.xlu0 %v1833, 64
      %v1871 = vpop.permute.xlu0 %1870
      %1872 = vrot.lane.b32.xlu0 %v1836, 64
      %v1873 = vpop.permute.xlu0 %1872
      %1874 = vrot.lane.b32.xlu0 %v1839, 64
      %v1875 = vpop.permute.xlu0 %1874
      %1876 = vrot.lane.b32.xlu0 %v1842, 64
      %v1877 = vpop.permute.xlu0 %1876
      %1878 = vrot.lane.b32.xlu0 %v1845, 64
      %v1879 = vpop.permute.xlu0 %1878
      %1880 = vrot.lane.b32.xlu0 %v1848, 64
      %v1881 = vpop.permute.xlu0 %1880
      %1882 = vrot.lane.b32.xlu0 %v1851, 64
      %v1883 = vpop.permute.xlu0 %1882
      %vm1884 = vcmask 64512
      %v1886 = vsel %vm1884, %v442, %v700
      %v1888 = vsel %vm1884, %v443, %v702
      %v1890 = vsel %vm1884, %v444, %v704
      %v1892 = vsel %vm1884, %v445, %v706
      %v1894 = vsel %vm1884, %v446, %v708
      %v1896 = vsel %vm1884, %v447, %v710
      %v1898 = vsel %vm1884, %v448, %v712
      %v1900 = vsel %vm1884, %v449, %v714
      %v1902 = vsel %vm1884, %v450, %v716
      %v1904 = vsel %vm1884, %v451, %v718
      %v1906 = vsel %vm1884, %v452, %v720
      %v1908 = vsel %vm1884, %v453, %v722
      %v1910 = vsel %vm1884, %v454, %v724
      %v1912 = vsel %vm1884, %v455, %v726
      %v1914 = vsel %vm1884, %v456, %v728
      %v1916 = vsel %vm1884, %v457, %v730
      %vm1917 = vcmask 130048
      %v1919 = vsel %vm1917, %v1886, %v829
      %v1921 = vsel %vm1917, %v1888, %v831
      %v1923 = vsel %vm1917, %v1890, %v833
      %v1925 = vsel %vm1917, %v1892, %v835
      %v1927 = vsel %vm1917, %v1894, %v837
      %v1929 = vsel %vm1917, %v1896, %v839
      %v1931 = vsel %vm1917, %v1898, %v841
      %v1933 = vsel %vm1917, %v1900, %v843
      %v1935 = vsel %vm1917, %v1902, %v845
      %v1937 = vsel %vm1917, %v1904, %v847
      %v1939 = vsel %vm1917, %v1906, %v849
      %v1941 = vsel %vm1917, %v1908, %v851
      %v1943 = vsel %vm1917, %v1910, %v853
      %v1945 = vsel %vm1917, %v1912, %v855
      %v1947 = vsel %vm1917, %v1914, %v857
      %v1949 = vsel %vm1917, %v1916, %v859
      %vm1950 = vcmask 195584
      %v1952 = vsel %vm1950, %v1919, %v941
      %v1954 = vsel %vm1950, %v1921, %v943
      %v1956 = vsel %vm1950, %v1923, %v945
      %v1958 = vsel %vm1950, %v1925, %v947
      %v1960 = vsel %vm1950, %v1927, %v949
      %v1962 = vsel %vm1950, %v1929, %v951
      %v1964 = vsel %vm1950, %v1931, %v953
      %v1966 = vsel %vm1950, %v1933, %v955
      %v1968 = vsel %vm1950, %v1935, %v957
      %v1970 = vsel %vm1950, %v1937, %v959
      %v1972 = vsel %vm1950, %v1939, %v961
      %v1974 = vsel %vm1950, %v1941, %v963
      %v1976 = vsel %vm1950, %v1943, %v965
      %v1978 = vsel %vm1950, %v1945, %v967
      %v1980 = vsel %vm1950, %v1947, %v969
      %v1982 = vsel %vm1950, %v1949, %v971
      %vm1983 = vcmask 261120
      %v1985 = vsel %vm1983, %v1952, %v1213
      %v1987 = vsel %vm1983, %v1954, %v1215
      %v1989 = vsel %vm1983, %v1956, %v1217
      %v1991 = vsel %vm1983, %v1958, %v1219
      %v1993 = vsel %vm1983, %v1960, %v1221
      %v1995 = vsel %vm1983, %v1962, %v1223
      %v1997 = vsel %vm1983, %v1964, %v1225
      %v1999 = vsel %vm1983, %v1966, %v1227
      %v2001 = vsel %vm1983, %v1968, %v1229
      %v2003 = vsel %vm1983, %v1970, %v1231
      %v2005 = vsel %vm1983, %v1972, %v1233
      %v2007 = vsel %vm1983, %v1974, %v1235
      %v2009 = vsel %vm1983, %v1976, %v1237
      %v2011 = vsel %vm1983, %v1978, %v1239
      %v2013 = vsel %vm1983, %v1980, %v1241
      %v2015 = vsel %vm1983, %v1982, %v1243
      %vm2016 = vcmask 326656
      %v2018 = vsel %vm2016, %v1985, %v1341
      %v2020 = vsel %vm2016, %v1987, %v1343
      %v2022 = vsel %vm2016, %v1989, %v1345
      %v2024 = vsel %vm2016, %v1991, %v1347
      %v2026 = vsel %vm2016, %v1993, %v1349
      %v2028 = vsel %vm2016, %v1995, %v1351
      %v2030 = vsel %vm2016, %v1997, %v1353
      %v2032 = vsel %vm2016, %v1999, %v1355
      %v2034 = vsel %vm2016, %v2001, %v1357
      %v2036 = vsel %vm2016, %v2003, %v1359
      %v2038 = vsel %vm2016, %v2005, %v1361
      %v2040 = vsel %vm2016, %v2007, %v1363
      %v2042 = vsel %vm2016, %v2009, %v1365
      %v2044 = vsel %vm2016, %v2011, %v1367
      %v2046 = vsel %vm2016, %v2013, %v1369
      %v2048 = vsel %vm2016, %v2015, %v1371
      %vm2049 = vcmask 392192
      %v2051 = vsel %vm2049, %v2018, %v1453
      %v2053 = vsel %vm2049, %v2020, %v1455
      %v2055 = vsel %vm2049, %v2022, %v1457
      %v2057 = vsel %vm2049, %v2024, %v1459
      %v2059 = vsel %vm2049, %v2026, %v1461
      %v2061 = vsel %vm2049, %v2028, %v1463
      %v2063 = vsel %vm2049, %v2030, %v1465
      %v2065 = vsel %vm2049, %v2032, %v1467
      %v2067 = vsel %vm2049, %v2034, %v1469
      %v2069 = vsel %vm2049, %v2036, %v1471
      %v2071 = vsel %vm2049, %v2038, %v1473
      %v2073 = vsel %vm2049, %v2040, %v1475
      %v2075 = vsel %vm2049, %v2042, %v1477
      %v2077 = vsel %vm2049, %v2044, %v1479
      %v2079 = vsel %vm2049, %v2046, %v1481
      %v2081 = vsel %vm2049, %v2048, %v1483
      %vm2082 = vcmask 457728
      %v2084 = vsel %vm2082, %v2051, %v1725
      %v2086 = vsel %vm2082, %v2053, %v1727
      %v2088 = vsel %vm2082, %v2055, %v1729
      %v2090 = vsel %vm2082, %v2057, %v1731
      %v2092 = vsel %vm2082, %v2059, %v1733
      %v2094 = vsel %vm2082, %v2061, %v1735
      %v2096 = vsel %vm2082, %v2063, %v1737
      %v2098 = vsel %vm2082, %v2065, %v1739
      %v2100 = vsel %vm2082, %v2067, %v1741
      %v2102 = vsel %vm2082, %v2069, %v1743
      %v2104 = vsel %vm2082, %v2071, %v1745
      %v2106 = vsel %vm2082, %v2073, %v1747
      %v2108 = vsel %vm2082, %v2075, %v1749
      %v2110 = vsel %vm2082, %v2077, %v1751
      %v2112 = vsel %vm2082, %v2079, %v1753
      %v2114 = vsel %vm2082, %v2081, %v1755
      %vm2115 = vcmask 523264
      %v2117 = vsel %vm2115, %v2084, %v1853
      %v2119 = vsel %vm2115, %v2086, %v1855
      %v2121 = vsel %vm2115, %v2088, %v1857
      %v2123 = vsel %vm2115, %v2090, %v1859
      %v2125 = vsel %vm2115, %v2092, %v1861
      %v2127 = vsel %vm2115, %v2094, %v1863
      %v2129 = vsel %vm2115, %v2096, %v1865
      %v2131 = vsel %vm2115, %v2098, %v1867
      %v2133 = vsel %vm2115, %v2100, %v1869
      %v2135 = vsel %vm2115, %v2102, %v1871
      %v2137 = vsel %vm2115, %v2104, %v1873
      %v2139 = vsel %vm2115, %v2106, %v1875
      %v2141 = vsel %vm2115, %v2108, %v1877
      %v2143 = vsel %vm2115, %v2110, %v1879
      %v2145 = vsel %vm2115, %v2112, %v1881
      %v2147 = vsel %vm2115, %v2114, %v1883
      %v2148 = vld [vmem:[%s1] sm:$0xf]
      %v2149 = vld [vmem:[%s1 + $0x4] sm:$0xf]
      %v2150 = vld [vmem:[%s1 + $0x8] sm:$0xf]
      %v2151 = vld [vmem:[%s1 + $0xc] sm:$0xf]
      %v2152 = vld [vmem:[%s1 + $0x10] sm:$0xf]
      %v2153 = vld [vmem:[%s1 + $0x14] sm:$0xf]
      %v2154 = vld [vmem:[%s1 + $0x18] sm:$0xf]
      %v2155 = vld [vmem:[%s1 + $0x1c] sm:$0xf]
      %v2156 = vld [vmem:[%s1 + $0x20] sm:$0xf]
      %v2166 = vunpack.c.l.b16 %v2148
      %v2167 = vunpack.c.l.b16 %v2149
      %v2168 = vunpack.c.l.b16 %v2150
      %v2169 = vunpack.c.l.b16 %v2151
      %v2170 = vunpack.c.l.b16 %v2152
      %v2171 = vunpack.c.l.b16 %v2153
      %v2172 = vunpack.c.l.b16 %v2154
      %v2173 = vunpack.c.l.b16 %v2155
      %v2174 = vunpack.c.l.b16 %v2156
      %v2175 = vpack.c.b16 %v2167, %v2166
      %v2176 = vpack.c.b16 %v2169, %v2168
      %v2177 = vpack.c.b16 %v2171, %v2170
      %v2178 = vpack.c.b16 %v2173, %v2172
      %v2179 = vpack.c.b16 %v2174, %v2174
      %vm2184 = vcmask 588800
      %v2185 = vsel %vm2184, %v2117, 0
      %v2187 = vsel %vm2184, %v2119, 0
      %v2189 = vsel %vm2184, %v2121, 0
      %v2191 = vsel %vm2184, %v2123, 0
      %v2193 = vsel %vm2184, %v2125, 0
      %v2195 = vsel %vm2184, %v2127, 0
      %v2197 = vsel %vm2184, %v2129, 0
      %v2199 = vsel %vm2184, %v2131, 0
      %v2201 = vsel %vm2184, %v2133, 0
      %v2203 = vsel %vm2184, %v2135, 0
      %v2205 = vsel %vm2184, %v2137, 0
      %v2207 = vsel %vm2184, %v2139, 0
      %v2209 = vsel %vm2184, %v2141, 0
      %v2211 = vsel %vm2184, %v2143, 0
      %v2213 = vsel %vm2184, %v2145, 0
      %v2215 = vsel %vm2184, %v2147, 0
      %vm2217 = vcmask 1043456
      %v2219 = vsel %vm2217, %v2179, 0
      %2221 = vmatprep.subr.bf16.mxu0 0
      %2222 = vmatpush1.bf16.msra.mxu0 0
      %2223 = vmatprep.subr.bf16.mxu0 0
      %2224 = vmatpush1.bf16.msra.mxu0 0
      %2225 = vmatprep.subr.bf16.mxu0 0
      %2226 = vmatpush1.bf16.msra.mxu0 0
      %2227 = vmatprep.subr.bf16.mxu0 0
      %2228 = vmatpush1.bf16.msra.mxu0 %v2219
      %2229 = vmatprep.subr.bf16.mxu0 0
      %2230 = vmatpush1.bf16.msra.mxu0 %v2178
      %2231 = vmatprep.subr.bf16.mxu0 0
      %2232 = vmatpush1.bf16.msra.mxu0 %v2177
      %2233 = vmatprep.subr.bf16.mxu0 0
      %2234 = vmatpush1.bf16.msra.mxu0 %v2176
      %2235 = vmatprep.subr.bf16.mxu0 0
      %2236 = vmatpush1.bf16.msra.mxu0 %v2175
      %2237 = vmatprep.subr.bf16.mxu0 0
      %2238 = vmatpush2.bf16.msra.mxu0 0
      %2239 = vmatprep.subr.bf16.mxu0 0
      %2240 = vmatpush2.bf16.msra.mxu0 0
      %2241 = vmatprep.subr.bf16.mxu0 0
      %2242 = vmatpush2.bf16.msra.mxu0 0
      %2243 = vmatprep.subr.bf16.mxu0 0
      %2244 = vmatpush2.bf16.msra.mxu0 0
      %2245 = vmatprep.subr.bf16.mxu0 0
      %2246 = vmatpush2.bf16.msra.mxu0 0
      %2247 = vmatprep.subr.bf16.mxu0 0
      %2248 = vmatpush2.bf16.msra.mxu0 0
      %2249 = vmatprep.subr.bf16.mxu0 0
      %2250 = vmatpush2.bf16.msra.mxu0 0
      %2251 = vmatprep.subr.bf16.mxu0 0
      %2252 = vmatpush2.bf16.msra.mxu0 0
      %2253 = vmatprep.mubr.bf16.mxu0 0
      %2254 = vmatmul.mubr.bf16.gmra.mxu0 %v2185
      %v2255 = vpop.f32.mrf.mxu0
      %v2256 = vadd.f32 0.0, %v2255
      %v2257 = vpop.f32.mrf.mxu0
      %v2258 = vpop.f32.mrf.mxu0
      %v2259 = vadd.f32 0.0, %v2258
      %v2260 = vpop.f32.mrf.mxu0
      %2261 = vmatprep.mubr.bf16.mxu0 0
      %2262 = vmatmul.mubr.bf16.gmra.mxu0 %v2187
      %v2263 = vpop.f32.mrf.mxu0
      %v2264 = vadd.f32 0.0, %v2263
      %v2265 = vpop.f32.mrf.mxu0
      %v2266 = vpop.f32.mrf.mxu0
      %v2267 = vadd.f32 0.0, %v2266
      %v2268 = vpop.f32.mrf.mxu0
      %2269 = vmatprep.mubr.bf16.mxu0 0
      %2270 = vmatmul.mubr.bf16.gmra.mxu0 %v2189
      %v2271 = vpop.f32.mrf.mxu0
      %v2272 = vadd.f32 0.0, %v2271
      %v2273 = vpop.f32.mrf.mxu0
      %v2274 = vpop.f32.mrf.mxu0
      %v2275 = vadd.f32 0.0, %v2274
      %v2276 = vpop.f32.mrf.mxu0
      %2277 = vmatprep.mubr.bf16.mxu0 0
      %2278 = vmatmul.mubr.bf16.gmra.mxu0 %v2191
      %v2279 = vpop.f32.mrf.mxu0
      %v2280 = vadd.f32 0.0, %v2279
      %v2281 = vpop.f32.mrf.mxu0
      %v2282 = vpop.f32.mrf.mxu0
      %v2283 = vadd.f32 0.0, %v2282
      %v2284 = vpop.f32.mrf.mxu0
      %2285 = vmatprep.mubr.bf16.mxu0 0
      %2286 = vmatmul.mubr.bf16.gmra.mxu0 %v2193
      %v2287 = vpop.f32.mrf.mxu0
      %v2288 = vadd.f32 0.0, %v2287
      %v2289 = vpop.f32.mrf.mxu0
      %v2290 = vpop.f32.mrf.mxu0
      %v2291 = vadd.f32 0.0, %v2290
      %v2292 = vpop.f32.mrf.mxu0
      %2293 = vmatprep.mubr.bf16.mxu0 0
      %2294 = vmatmul.mubr.bf16.gmra.mxu0 %v2195
      %v2295 = vpop.f32.mrf.mxu0
      %v2296 = vadd.f32 0.0, %v2295
      %v2297 = vpop.f32.mrf.mxu0
      %v2298 = vpop.f32.mrf.mxu0
      %v2299 = vadd.f32 0.0, %v2298
      %v2300 = vpop.f32.mrf.mxu0
      %2301 = vmatprep.mubr.bf16.mxu0 0
      %2302 = vmatmul.mubr.bf16.gmra.mxu0 %v2197
      %v2303 = vpop.f32.mrf.mxu0
      %v2304 = vadd.f32 0.0, %v2303
      %v2305 = vpop.f32.mrf.mxu0
      %v2306 = vpop.f32.mrf.mxu0
      %v2307 = vadd.f32 0.0, %v2306
      %v2308 = vpop.f32.mrf.mxu0
      %2309 = vmatprep.mubr.bf16.mxu0 0
      %2310 = vmatmul.mubr.bf16.gmra.mxu0 %v2199
      %v2311 = vpop.f32.mrf.mxu0
      %v2312 = vadd.f32 0.0, %v2311
      %v2313 = vpop.f32.mrf.mxu0
      %v2314 = vpop.f32.mrf.mxu0
      %v2315 = vadd.f32 0.0, %v2314
      %v2316 = vpop.f32.mrf.mxu0
      %2317 = vmatprep.mubr.bf16.mxu0 0
      %2318 = vmatmul.mubr.bf16.gmra.mxu0 %v2201
      %v2319 = vpop.f32.mrf.mxu0
      %v2320 = vadd.f32 0.0, %v2319
      %v2321 = vpop.f32.mrf.mxu0
      %v2322 = vpop.f32.mrf.mxu0
      %v2323 = vadd.f32 0.0, %v2322
      %v2324 = vpop.f32.mrf.mxu0
      %2325 = vmatprep.mubr.bf16.mxu0 0
      %2326 = vmatmul.mubr.bf16.gmra.mxu0 %v2203
      %v2327 = vpop.f32.mrf.mxu0
      %v2328 = vadd.f32 0.0, %v2327
      %v2329 = vpop.f32.mrf.mxu0
      %v2330 = vpop.f32.mrf.mxu0
      %v2331 = vadd.f32 0.0, %v2330
      %v2332 = vpop.f32.mrf.mxu0
      %2333 = vmatprep.mubr.bf16.mxu0 0
      %2334 = vmatmul.mubr.bf16.gmra.mxu0 %v2205
      %v2335 = vpop.f32.mrf.mxu0
      %v2336 = vadd.f32 0.0, %v2335
      %v2337 = vpop.f32.mrf.mxu0
      %v2338 = vpop.f32.mrf.mxu0
      %v2339 = vadd.f32 0.0, %v2338
      %v2340 = vpop.f32.mrf.mxu0
      %2341 = vmatprep.mubr.bf16.mxu0 0
      %2342 = vmatmul.mubr.bf16.gmra.mxu0 %v2207
      %v2343 = vpop.f32.mrf.mxu0
      %v2344 = vadd.f32 0.0, %v2343
      %v2345 = vpop.f32.mrf.mxu0
      %v2346 = vpop.f32.mrf.mxu0
      %v2347 = vadd.f32 0.0, %v2346
      %v2348 = vpop.f32.mrf.mxu0
      %2349 = vmatprep.mubr.bf16.mxu0 0
      %2350 = vmatmul.mubr.bf16.gmra.mxu0 %v2209
      %v2351 = vpop.f32.mrf.mxu0
      %v2352 = vadd.f32 0.0, %v2351
      %v2353 = vpop.f32.mrf.mxu0
      %v2354 = vpop.f32.mrf.mxu0
      %v2355 = vadd.f32 0.0, %v2354
      %v2356 = vpop.f32.mrf.mxu0
      %2357 = vmatprep.mubr.bf16.mxu0 0
      %2358 = vmatmul.mubr.bf16.gmra.mxu0 %v2211
      %v2359 = vpop.f32.mrf.mxu0
      %v2360 = vadd.f32 0.0, %v2359
      %v2361 = vpop.f32.mrf.mxu0
      %v2362 = vpop.f32.mrf.mxu0
      %v2363 = vadd.f32 0.0, %v2362
      %v2364 = vpop.f32.mrf.mxu0
      %2365 = vmatprep.mubr.bf16.mxu0 0
      %2366 = vmatmul.mubr.bf16.gmra.mxu0 %v2213
      %v2367 = vpop.f32.mrf.mxu0
      %v2368 = vadd.f32 0.0, %v2367
      %v2369 = vpop.f32.mrf.mxu0
      %v2370 = vpop.f32.mrf.mxu0
      %v2371 = vadd.f32 0.0, %v2370
      %v2372 = vpop.f32.mrf.mxu0
      %2373 = vmatprep.mubr.bf16.mxu0 0
      %2374 = vmatmul.mubr.bf16.gmra.mxu0 %v2215
      %v2375 = vpop.f32.mrf.mxu0
      %v2376 = vadd.f32 0.0, %v2375
      %v2377 = vpop.f32.mrf.mxu0
      %v2378 = vpop.f32.mrf.mxu0
      %v2379 = vadd.f32 0.0, %v2378
      %v2380 = vpop.f32.mrf.mxu0
      %2381 = vdwg.mxu0
      %s2382 = smul.u32 %s15, 256
      %s2383 = scalar_lea.vmem [#allocation2], %s2382
      %2384 = vst [vmem:[%s2383] sm:$0xff] %v2256
      %2385 = vst [vmem:[%s2383 + $0x8] sm:$0xff] %v2259
      %2386 = vst [vmem:[%s2383 + $0x10] sm:$0xff] %v2264
      %2387 = vst [vmem:[%s2383 + $0x18] sm:$0xff] %v2267
      %2388 = vst [vmem:[%s2383 + $0x20] sm:$0xff] %v2272
      %2389 = vst [vmem:[%s2383 + $0x28] sm:$0xff] %v2275
      %2390 = vst [vmem:[%s2383 + $0x30] sm:$0xff] %v2280
      %2391 = vst [vmem:[%s2383 + $0x38] sm:$0xff] %v2283
      %2392 = vst [vmem:[%s2383 + $0x40] sm:$0xff] %v2288
      %2393 = vst [vmem:[%s2383 + $0x48] sm:$0xff] %v2291
      %2394 = vst [vmem:[%s2383 + $0x50] sm:$0xff] %v2296
      %2395 = vst [vmem:[%s2383 + $0x58] sm:$0xff] %v2299
      %2396 = vst [vmem:[%s2383 + $0x60] sm:$0xff] %v2304
      %2397 = vst [vmem:[%s2383 + $0x68] sm:$0xff] %v2307
      %2398 = vst [vmem:[%s2383 + $0x70] sm:$0xff] %v2312
      %2399 = vst [vmem:[%s2383 + $0x78] sm:$0xff] %v2315
      %2400 = vst [vmem:[%s2383 + $0x80] sm:$0xff] %v2320
      %2401 = vst [vmem:[%s2383 + $0x88] sm:$0xff] %v2323
      %2402 = vst [vmem:[%s2383 + $0x90] sm:$0xff] %v2328
      %2403 = vst [vmem:[%s2383 + $0x98] sm:$0xff] %v2331
      %2404 = vst [vmem:[%s2383 + $0xa0] sm:$0xff] %v2336
      %2405 = vst [vmem:[%s2383 + $0xa8] sm:$0xff] %v2339
      %2406 = vst [vmem:[%s2383 + $0xb0] sm:$0xff] %v2344
      %2407 = vst [vmem:[%s2383 + $0xb8] sm:$0xff] %v2347
      %2408 = vst [vmem:[%s2383 + $0xc0] sm:$0xff] %v2352
      %2409 = vst [vmem:[%s2383 + $0xc8] sm:$0xff] %v2355
      %2410 = vst [vmem:[%s2383 + $0xd0] sm:$0xff] %v2360
      %2411 = vst [vmem:[%s2383 + $0xd8] sm:$0xff] %v2363
      %2412 = vst [vmem:[%s2383 + $0xe0] sm:$0xff] %v2368
      %2413 = vst [vmem:[%s2383 + $0xe8] sm:$0xff] %v2371
      %2414 = vst [vmem:[%s2383 + $0xf0] sm:$0xff] %v2376
      %2415 = vst [vmem:[%s2383 + $0xf8] sm:$0xff] %v2379
      %p2416 = scmp.eq.s32.totalorder %s15, 1
      // Predicated region
      $region37: #{basic_conv2d_forward.1} parent=35 // pred_check
        %p2417 = pneg %p2416
      $region38: #{basic_conv2d_forward.1} parent=35 // pred_check_branch
        %2419 = sbr.rel (%p2417) target = $region40
      $region39: #{basic_conv2d_forward.1} parent=35 // pred_region
        %v2420 = vld [vmem:[#allocation2] sm:$0xff]
        %v2421 = vld [vmem:[#allocation2 + $0x8] sm:$0xff]
        %v2422 = vld [vmem:[#allocation2 + $0x10] sm:$0xff]
        %v2423 = vld [vmem:[#allocation2 + $0x18] sm:$0xff]
        %v2424 = vld [vmem:[#allocation2 + $0x20] sm:$0xff]
        %v2425 = vld [vmem:[#allocation2 + $0x28] sm:$0xff]
        %v2426 = vld [vmem:[#allocation2 + $0x30] sm:$0xff]
        %v2427 = vld [vmem:[#allocation2 + $0x38] sm:$0xff]
        %v2428 = vld [vmem:[#allocation2 + $0x40] sm:$0xff]
        %v2429 = vld [vmem:[#allocation2 + $0x48] sm:$0xff]
        %v2430 = vld [vmem:[#allocation2 + $0x50] sm:$0xff]
        %v2431 = vld [vmem:[#allocation2 + $0x58] sm:$0xff]
        %v2432 = vld [vmem:[#allocation2 + $0x60] sm:$0xff]
        %v2433 = vld [vmem:[#allocation2 + $0x68] sm:$0xff]
        %v2434 = vld [vmem:[#allocation2 + $0x70] sm:$0xff]
        %v2435 = vld [vmem:[#allocation2 + $0x78] sm:$0xff]
        %v2436 = vld [vmem:[#allocation2 + $0x80] sm:$0xff]
        %v2437 = vld [vmem:[#allocation2 + $0x88] sm:$0xff]
        %v2438 = vld [vmem:[#allocation2 + $0x90] sm:$0xff]
        %v2439 = vld [vmem:[#allocation2 + $0x98] sm:$0xff]
        %v2440 = vld [vmem:[#allocation2 + $0xa0] sm:$0xff]
        %v2441 = vld [vmem:[#allocation2 + $0xa8] sm:$0xff]
        %v2442 = vld [vmem:[#allocation2 + $0xb0] sm:$0xff]
        %v2443 = vld [vmem:[#allocation2 + $0xb8] sm:$0xff]
        %v2444 = vld [vmem:[#allocation2 + $0xc0] sm:$0xff]
        %v2445 = vld [vmem:[#allocation2 + $0xc8] sm:$0xff]
        %v2446 = vld [vmem:[#allocation2 + $0xd0] sm:$0xff]
        %v2447 = vld [vmem:[#allocation2 + $0xd8] sm:$0xff]
        %v2448 = vld [vmem:[#allocation2 + $0xe0] sm:$0xff]
        %v2449 = vld [vmem:[#allocation2 + $0xe8] sm:$0xff]
        %v2450 = vld [vmem:[#allocation2 + $0xf0] sm:$0xff]
        %v2451 = vld [vmem:[#allocation2 + $0xf8] sm:$0xff]
        %v2452 = vld [vmem:[#allocation2 + $0x100] sm:$0xff]
        %v2453 = vld [vmem:[#allocation2 + $0x108] sm:$0xff]
        %v2454 = vld [vmem:[#allocation2 + $0x110] sm:$0xff]
        %v2455 = vld [vmem:[#allocation2 + $0x118] sm:$0xff]
        %v2456 = vld [vmem:[#allocation2 + $0x120] sm:$0xff]
        %v2457 = vld [vmem:[#allocation2 + $0x128] sm:$0xff]
        %v2458 = vld [vmem:[#allocation2 + $0x130] sm:$0xff]
        %v2459 = vld [vmem:[#allocation2 + $0x138] sm:$0xff]
        %v2460 = vld [vmem:[#allocation2 + $0x140] sm:$0xff]
        %v2461 = vld [vmem:[#allocation2 + $0x148] sm:$0xff]
        %v2462 = vld [vmem:[#allocation2 + $0x150] sm:$0xff]
        %v2463 = vld [vmem:[#allocation2 + $0x158] sm:$0xff]
        %v2464 = vld [vmem:[#allocation2 + $0x160] sm:$0xff]
        %v2465 = vld [vmem:[#allocation2 + $0x168] sm:$0xff]
        %v2466 = vld [vmem:[#allocation2 + $0x170] sm:$0xff]
        %v2467 = vld [vmem:[#allocation2 + $0x178] sm:$0xff]
        %v2468 = vld [vmem:[#allocation2 + $0x180] sm:$0xff]
        %v2469 = vld [vmem:[#allocation2 + $0x188] sm:$0xff]
        %v2470 = vld [vmem:[#allocation2 + $0x190] sm:$0xff]
        %v2471 = vld [vmem:[#allocation2 + $0x198] sm:$0xff]
        %v2472 = vld [vmem:[#allocation2 + $0x1a0] sm:$0xff]
        %v2473 = vld [vmem:[#allocation2 + $0x1a8] sm:$0xff]
        %v2474 = vld [vmem:[#allocation2 + $0x1b0] sm:$0xff]
        %v2475 = vld [vmem:[#allocation2 + $0x1b8] sm:$0xff]
        %v2476 = vld [vmem:[#allocation2 + $0x1c0] sm:$0xff]
        %v2477 = vld [vmem:[#allocation2 + $0x1c8] sm:$0xff]
        %v2478 = vld [vmem:[#allocation2 + $0x1d0] sm:$0xff]
        %v2479 = vld [vmem:[#allocation2 + $0x1d8] sm:$0xff]
        %v2480 = vld [vmem:[#allocation2 + $0x1e0] sm:$0xff]
        %v2481 = vld [vmem:[#allocation2 + $0x1e8] sm:$0xff]
        %v2482 = vld [vmem:[#allocation2 + $0x1f0] sm:$0xff]
        %v2483 = vld [vmem:[#allocation2 + $0x1f8] sm:$0xff]
        %v2484 = vadd.f32 %v2420, %v2421
        %v2485 = vadd.f32 %v2484, %v2422
        %v2486 = vadd.f32 %v2485, %v2423
        %v2487 = vadd.f32 %v2486, %v2424
        %v2488 = vadd.f32 %v2487, %v2425
        %v2489 = vadd.f32 %v2488, %v2426
        %v2490 = vadd.f32 %v2489, %v2427
        %v2491 = vadd.f32 %v2490, %v2428
        %v2492 = vadd.f32 %v2491, %v2429
        %v2493 = vadd.f32 %v2492, %v2430
        %v2494 = vadd.f32 %v2493, %v2431
        %v2495 = vadd.f32 %v2494, %v2432
        %v2496 = vadd.f32 %v2495, %v2433
        %v2497 = vadd.f32 %v2496, %v2434
        %v2498 = vadd.f32 %v2497, %v2435
        %v2499 = vadd.f32 %v2498, %v2436
        %v2500 = vadd.f32 %v2499, %v2437
        %v2501 = vadd.f32 %v2500, %v2438
        %v2502 = vadd.f32 %v2501, %v2439
        %v2503 = vadd.f32 %v2502, %v2440
        %v2504 = vadd.f32 %v2503, %v2441
        %v2505 = vadd.f32 %v2504, %v2442
        %v2506 = vadd.f32 %v2505, %v2443
        %v2507 = vadd.f32 %v2506, %v2444
        %v2508 = vadd.f32 %v2507, %v2445
        %v2509 = vadd.f32 %v2508, %v2446
        %v2510 = vadd.f32 %v2509, %v2447
        %v2511 = vadd.f32 %v2510, %v2448
        %v2512 = vadd.f32 %v2511, %v2449
        %v2513 = vadd.f32 %v2512, %v2450
        %v2514 = vadd.f32 %v2513, %v2451
        %v2515 = vadd.f32 %v2514, %v2452
        %v2516 = vadd.f32 %v2515, %v2453
        %v2517 = vadd.f32 %v2516, %v2454
        %v2518 = vadd.f32 %v2517, %v2455
        %v2519 = vadd.f32 %v2518, %v2456
        %v2520 = vadd.f32 %v2519, %v2457
        %v2521 = vadd.f32 %v2520, %v2458
        %v2522 = vadd.f32 %v2521, %v2459
        %v2523 = vadd.f32 %v2522, %v2460
        %v2524 = vadd.f32 %v2523, %v2461
        %v2525 = vadd.f32 %v2524, %v2462
        %v2526 = vadd.f32 %v2525, %v2463
        %v2527 = vadd.f32 %v2526, %v2464
        %v2528 = vadd.f32 %v2527, %v2465
        %v2529 = vadd.f32 %v2528, %v2466
        %v2530 = vadd.f32 %v2529, %v2467
        %v2531 = vadd.f32 %v2530, %v2468
        %v2532 = vadd.f32 %v2531, %v2469
        %v2533 = vadd.f32 %v2532, %v2470
        %v2534 = vadd.f32 %v2533, %v2471
        %v2535 = vadd.f32 %v2534, %v2472
        %v2536 = vadd.f32 %v2535, %v2473
        %v2537 = vadd.f32 %v2536, %v2474
        %v2538 = vadd.f32 %v2537, %v2475
        %v2539 = vadd.f32 %v2538, %v2476
        %v2540 = vadd.f32 %v2539, %v2477
        %v2541 = vadd.f32 %v2540, %v2478
        %v2542 = vadd.f32 %v2541, %v2479
        %v2543 = vadd.f32 %v2542, %v2480
        %v2544 = vadd.f32 %v2543, %v2481
        %v2545 = vadd.f32 %v2544, %v2482
        %v2546 = vadd.f32 %v2545, %v2483
        %v2547 = vrot.slane %v2546, 4
        %v2548 = vadd.f32 %v2546, %v2547
        %v2549 = vrot.slane %v2548, 2
        %v2550 = vadd.f32 %v2548, %v2549
        %v2551 = vrot.slane %v2550, 1
        %v2552 = vadd.f32 %v2550, %v2551
        %v2553 = vmul.f32 %v2552, 0.001953125
        %v2554 = vsub.f32 %v2420, %v2553
        %v2555 = vsub.f32 %v2421, %v2553
        %v2556 = vsub.f32 %v2422, %v2553
        %v2557 = vsub.f32 %v2423, %v2553
        %v2558 = vsub.f32 %v2424, %v2553
        %v2559 = vsub.f32 %v2425, %v2553
        %v2560 = vsub.f32 %v2426, %v2553
        %v2561 = vsub.f32 %v2427, %v2553
        %v2562 = vsub.f32 %v2428, %v2553
        %v2563 = vsub.f32 %v2429, %v2553
        %v2564 = vsub.f32 %v2430, %v2553
        %v2565 = vsub.f32 %v2431, %v2553
        %v2566 = vsub.f32 %v2432, %v2553
        %v2567 = vsub.f32 %v2433, %v2553
        %v2568 = vsub.f32 %v2434, %v2553
        %v2569 = vsub.f32 %v2435, %v2553
        %v2570 = vsub.f32 %v2436, %v2553
        %v2571 = vsub.f32 %v2437, %v2553
        %v2572 = vsub.f32 %v2438, %v2553
        %v2573 = vsub.f32 %v2439, %v2553
        %v2574 = vsub.f32 %v2440, %v2553
        %v2575 = vsub.f32 %v2441, %v2553
        %v2576 = vsub.f32 %v2442, %v2553
        %v2577 = vsub.f32 %v2443, %v2553
        %v2578 = vsub.f32 %v2444, %v2553
        %v2579 = vsub.f32 %v2445, %v2553
        %v2580 = vsub.f32 %v2446, %v2553
        %v2581 = vsub.f32 %v2447, %v2553
        %v2582 = vsub.f32 %v2448, %v2553
        %v2583 = vsub.f32 %v2449, %v2553
        %v2584 = vsub.f32 %v2450, %v2553
        %v2585 = vsub.f32 %v2451, %v2553
        %v2586 = vsub.f32 %v2452, %v2553
        %v2587 = vsub.f32 %v2453, %v2553
        %v2588 = vsub.f32 %v2454, %v2553
        %v2589 = vsub.f32 %v2455, %v2553
        %v2590 = vsub.f32 %v2456, %v2553
        %v2591 = vsub.f32 %v2457, %v2553
        %v2592 = vsub.f32 %v2458, %v2553
        %v2593 = vsub.f32 %v2459, %v2553
        %v2594 = vsub.f32 %v2460, %v2553
        %v2595 = vsub.f32 %v2461, %v2553
        %v2596 = vsub.f32 %v2462, %v2553
        %v2597 = vsub.f32 %v2463, %v2553
        %v2598 = vsub.f32 %v2464, %v2553
        %v2599 = vsub.f32 %v2465, %v2553
        %v2600 = vsub.f32 %v2466, %v2553
        %v2601 = vsub.f32 %v2467, %v2553
        %v2602 = vsub.f32 %v2468, %v2553
        %v2603 = vsub.f32 %v2469, %v2553
        %v2604 = vsub.f32 %v2470, %v2553
        %v2605 = vsub.f32 %v2471, %v2553
        %v2606 = vsub.f32 %v2472, %v2553
        %v2607 = vsub.f32 %v2473, %v2553
        %v2608 = vsub.f32 %v2474, %v2553
        %v2609 = vsub.f32 %v2475, %v2553
        %v2610 = vsub.f32 %v2476, %v2553
        %v2611 = vsub.f32 %v2477, %v2553
        %v2612 = vsub.f32 %v2478, %v2553
        %v2613 = vsub.f32 %v2479, %v2553
        %v2614 = vsub.f32 %v2480, %v2553
        %v2615 = vsub.f32 %v2481, %v2553
        %v2616 = vsub.f32 %v2482, %v2553
        %v2617 = vsub.f32 %v2483, %v2553
        %v2618 = vmul.f32 %v2554, %v2554
        %v2619 = vmul.f32 %v2555, %v2555
        %v2620 = vmul.f32 %v2556, %v2556
        %v2621 = vmul.f32 %v2557, %v2557
        %v2622 = vmul.f32 %v2558, %v2558
        %v2623 = vmul.f32 %v2559, %v2559
        %v2624 = vmul.f32 %v2560, %v2560
        %v2625 = vmul.f32 %v2561, %v2561
        %v2626 = vmul.f32 %v2562, %v2562
        %v2627 = vmul.f32 %v2563, %v2563
        %v2628 = vmul.f32 %v2564, %v2564
        %v2629 = vmul.f32 %v2565, %v2565
        %v2630 = vmul.f32 %v2566, %v2566
        %v2631 = vmul.f32 %v2567, %v2567
        %v2632 = vmul.f32 %v2568, %v2568
        %v2633 = vmul.f32 %v2569, %v2569
        %v2634 = vmul.f32 %v2570, %v2570
        %v2635 = vmul.f32 %v2571, %v2571
        %v2636 = vmul.f32 %v2572, %v2572
        %v2637 = vmul.f32 %v2573, %v2573
        %v2638 = vmul.f32 %v2574, %v2574
        %v2639 = vmul.f32 %v2575, %v2575
        %v2640 = vmul.f32 %v2576, %v2576
        %v2641 = vmul.f32 %v2577, %v2577
        %v2642 = vmul.f32 %v2578, %v2578
        %v2643 = vmul.f32 %v2579, %v2579
        %v2644 = vmul.f32 %v2580, %v2580
        %v2645 = vmul.f32 %v2581, %v2581
        %v2646 = vmul.f32 %v2582, %v2582
        %v2647 = vmul.f32 %v2583, %v2583
        %v2648 = vmul.f32 %v2584, %v2584
        %v2649 = vmul.f32 %v2585, %v2585
        %v2650 = vmul.f32 %v2586, %v2586
        %v2651 = vmul.f32 %v2587, %v2587
        %v2652 = vmul.f32 %v2588, %v2588
        %v2653 = vmul.f32 %v2589, %v2589
        %v2654 = vmul.f32 %v2590, %v2590
        %v2655 = vmul.f32 %v2591, %v2591
        %v2656 = vmul.f32 %v2592, %v2592
        %v2657 = vmul.f32 %v2593, %v2593
        %v2658 = vmul.f32 %v2594, %v2594
        %v2659 = vmul.f32 %v2595, %v2595
        %v2660 = vmul.f32 %v2596, %v2596
        %v2661 = vmul.f32 %v2597, %v2597
        %v2662 = vmul.f32 %v2598, %v2598
        %v2663 = vmul.f32 %v2599, %v2599
        %v2664 = vmul.f32 %v2600, %v2600
        %v2665 = vmul.f32 %v2601, %v2601
        %v2666 = vmul.f32 %v2602, %v2602
        %v2667 = vmul.f32 %v2603, %v2603
        %v2668 = vmul.f32 %v2604, %v2604
        %v2669 = vmul.f32 %v2605, %v2605
        %v2670 = vmul.f32 %v2606, %v2606
        %v2671 = vmul.f32 %v2607, %v2607
        %v2672 = vmul.f32 %v2608, %v2608
        %v2673 = vmul.f32 %v2609, %v2609
        %v2674 = vmul.f32 %v2610, %v2610
        %v2675 = vmul.f32 %v2611, %v2611
        %v2676 = vmul.f32 %v2612, %v2612
        %v2677 = vmul.f32 %v2613, %v2613
        %v2678 = vmul.f32 %v2614, %v2614
        %v2679 = vmul.f32 %v2615, %v2615
        %v2680 = vmul.f32 %v2616, %v2616
        %v2681 = vmul.f32 %v2617, %v2617
        %v2682 = vadd.f32 %v2618, %v2619
        %v2683 = vadd.f32 %v2682, %v2620
        %v2684 = vadd.f32 %v2683, %v2621
        %v2685 = vadd.f32 %v2684, %v2622
        %v2686 = vadd.f32 %v2685, %v2623
        %v2687 = vadd.f32 %v2686, %v2624
        %v2688 = vadd.f32 %v2687, %v2625
        %v2689 = vadd.f32 %v2688, %v2626
        %v2690 = vadd.f32 %v2689, %v2627
        %v2691 = vadd.f32 %v2690, %v2628
        %v2692 = vadd.f32 %v2691, %v2629
        %v2693 = vadd.f32 %v2692, %v2630
        %v2694 = vadd.f32 %v2693, %v2631
        %v2695 = vadd.f32 %v2694, %v2632
        %v2696 = vadd.f32 %v2695, %v2633
        %v2697 = vadd.f32 %v2696, %v2634
        %v2698 = vadd.f32 %v2697, %v2635
        %v2699 = vadd.f32 %v2698, %v2636
        %v2700 = vadd.f32 %v2699, %v2637
        %v2701 = vadd.f32 %v2700, %v2638
        %v2702 = vadd.f32 %v2701, %v2639
        %v2703 = vadd.f32 %v2702, %v2640
        %v2704 = vadd.f32 %v2703, %v2641
        %v2705 = vadd.f32 %v2704, %v2642
        %v2706 = vadd.f32 %v2705, %v2643
        %v2707 = vadd.f32 %v2706, %v2644
        %v2708 = vadd.f32 %v2707, %v2645
        %v2709 = vadd.f32 %v2708, %v2646
        %v2710 = vadd.f32 %v2709, %v2647
        %v2711 = vadd.f32 %v2710, %v2648
        %v2712 = vadd.f32 %v2711, %v2649
        %v2713 = vadd.f32 %v2712, %v2650
        %v2714 = vadd.f32 %v2713, %v2651
        %v2715 = vadd.f32 %v2714, %v2652
        %v2716 = vadd.f32 %v2715, %v2653
        %v2717 = vadd.f32 %v2716, %v2654
        %v2718 = vadd.f32 %v2717, %v2655
        %v2719 = vadd.f32 %v2718, %v2656
        %v2720 = vadd.f32 %v2719, %v2657
        %v2721 = vadd.f32 %v2720, %v2658
        %v2722 = vadd.f32 %v2721, %v2659
        %v2723 = vadd.f32 %v2722, %v2660
        %v2724 = vadd.f32 %v2723, %v2661
        %v2725 = vadd.f32 %v2724, %v2662
        %v2726 = vadd.f32 %v2725, %v2663
        %v2727 = vadd.f32 %v2726, %v2664
        %v2728 = vadd.f32 %v2727, %v2665
        %v2729 = vadd.f32 %v2728, %v2666
        %v2730 = vadd.f32 %v2729, %v2667
        %v2731 = vadd.f32 %v2730, %v2668
        %v2732 = vadd.f32 %v2731, %v2669
        %v2733 = vadd.f32 %v2732, %v2670
        %v2734 = vadd.f32 %v2733, %v2671
        %v2735 = vadd.f32 %v2734, %v2672
        %v2736 = vadd.f32 %v2735, %v2673
        %v2737 = vadd.f32 %v2736, %v2674
        %v2738 = vadd.f32 %v2737, %v2675
        %v2739 = vadd.f32 %v2738, %v2676
        %v2740 = vadd.f32 %v2739, %v2677
        %v2741 = vadd.f32 %v2740, %v2678
        %v2742 = vadd.f32 %v2741, %v2679
        %v2743 = vadd.f32 %v2742, %v2680
        %v2744 = vadd.f32 %v2743, %v2681
        %v2745 = vrot.slane %v2744, 4
        %v2746 = vadd.f32 %v2744, %v2745
        %v2747 = vrot.slane %v2746, 2
        %v2748 = vadd.f32 %v2746, %v2747
        %v2749 = vrot.slane %v2748, 1
        %v2750 = vadd.f32 %v2748, %v2749
        %v2751 = vmul.f32 %v2750, 0.001953125
        %v2752 = vld [vmem:[%s2] sm:$0x1]
        %v2753 = vadd.f32 %v2751, 0.001
        %v2754 = vrsqrt.pop %v2753
        %v2755 = vmul.f32 %v2752, %v2754
        %v2756 = vld [vmem:[%s3] sm:$0x1]
        %v2757 = vmul.f32 %v2553, %v2755
        %v2758 = vsub.f32 %v2756, %v2757
        %v2760 = vlaneseq
        %v2761 = vshrl.u32 %v2760, 7
        %v2762 = vsub.s32 0, %v2761
        %v2763 = vrot.slane %v2755, %v2762
        %v2765 = vmul.f32 %v2420, %v2763
        %v2766 = vmul.f32 %v2421, %v2763
        %v2767 = vmul.f32 %v2422, %v2763
        %v2768 = vmul.f32 %v2423, %v2763
        %v2769 = vmul.f32 %v2424, %v2763
        %v2770 = vmul.f32 %v2425, %v2763
        %v2771 = vmul.f32 %v2426, %v2763
        %v2772 = vmul.f32 %v2427, %v2763
        %v2773 = vmul.f32 %v2428, %v2763
        %v2774 = vmul.f32 %v2429, %v2763
        %v2775 = vmul.f32 %v2430, %v2763
        %v2776 = vmul.f32 %v2431, %v2763
        %v2777 = vmul.f32 %v2432, %v2763
        %v2778 = vmul.f32 %v2433, %v2763
        %v2779 = vmul.f32 %v2434, %v2763
        %v2780 = vmul.f32 %v2435, %v2763
        %v2781 = vmul.f32 %v2436, %v2763
        %v2782 = vmul.f32 %v2437, %v2763
        %v2783 = vmul.f32 %v2438, %v2763
        %v2784 = vmul.f32 %v2439, %v2763
        %v2785 = vmul.f32 %v2440, %v2763
        %v2786 = vmul.f32 %v2441, %v2763
        %v2787 = vmul.f32 %v2442, %v2763
        %v2788 = vmul.f32 %v2443, %v2763
        %v2789 = vmul.f32 %v2444, %v2763
        %v2790 = vmul.f32 %v2445, %v2763
        %v2791 = vmul.f32 %v2446, %v2763
        %v2792 = vmul.f32 %v2447, %v2763
        %v2793 = vmul.f32 %v2448, %v2763
        %v2794 = vmul.f32 %v2449, %v2763
        %v2795 = vmul.f32 %v2450, %v2763
        %v2796 = vmul.f32 %v2451, %v2763
        %v2797 = vmul.f32 %v2452, %v2763
        %v2798 = vmul.f32 %v2453, %v2763
        %v2799 = vmul.f32 %v2454, %v2763
        %v2800 = vmul.f32 %v2455, %v2763
        %v2801 = vmul.f32 %v2456, %v2763
        %v2802 = vmul.f32 %v2457, %v2763
        %v2803 = vmul.f32 %v2458, %v2763
        %v2804 = vmul.f32 %v2459, %v2763
        %v2805 = vmul.f32 %v2460, %v2763
        %v2806 = vmul.f32 %v2461, %v2763
        %v2807 = vmul.f32 %v2462, %v2763
        %v2808 = vmul.f32 %v2463, %v2763
        %v2809 = vmul.f32 %v2464, %v2763
        %v2810 = vmul.f32 %v2465, %v2763
        %v2811 = vmul.f32 %v2466, %v2763
        %v2812 = vmul.f32 %v2467, %v2763
        %v2813 = vmul.f32 %v2468, %v2763
        %v2814 = vmul.f32 %v2469, %v2763
        %v2815 = vmul.f32 %v2470, %v2763
        %v2816 = vmul.f32 %v2471, %v2763
        %v2817 = vmul.f32 %v2472, %v2763
        %v2818 = vmul.f32 %v2473, %v2763
        %v2819 = vmul.f32 %v2474, %v2763
        %v2820 = vmul.f32 %v2475, %v2763
        %v2821 = vmul.f32 %v2476, %v2763
        %v2822 = vmul.f32 %v2477, %v2763
        %v2823 = vmul.f32 %v2478, %v2763
        %v2824 = vmul.f32 %v2479, %v2763
        %v2825 = vmul.f32 %v2480, %v2763
        %v2826 = vmul.f32 %v2481, %v2763
        %v2827 = vmul.f32 %v2482, %v2763
        %v2828 = vmul.f32 %v2483, %v2763
        %v2830 = vlaneseq
        %v2831 = vshrl.u32 %v2830, 7
        %v2832 = vsub.s32 0, %v2831
        %v2833 = vrot.slane %v2758, %v2832
        %v2835 = vadd.f32 %v2765, %v2833
        %v2836 = vadd.f32 %v2766, %v2833
        %v2837 = vadd.f32 %v2767, %v2833
        %v2838 = vadd.f32 %v2768, %v2833
        %v2839 = vadd.f32 %v2769, %v2833
        %v2840 = vadd.f32 %v2770, %v2833
        %v2841 = vadd.f32 %v2771, %v2833
        %v2842 = vadd.f32 %v2772, %v2833
        %v2843 = vadd.f32 %v2773, %v2833
        %v2844 = vadd.f32 %v2774, %v2833
        %v2845 = vadd.f32 %v2775, %v2833
        %v2846 = vadd.f32 %v2776, %v2833
        %v2847 = vadd.f32 %v2777, %v2833
        %v2848 = vadd.f32 %v2778, %v2833
        %v2849 = vadd.f32 %v2779, %v2833
        %v2850 = vadd.f32 %v2780, %v2833
        %v2851 = vadd.f32 %v2781, %v2833
        %v2852 = vadd.f32 %v2782, %v2833
        %v2853 = vadd.f32 %v2783, %v2833
        %v2854 = vadd.f32 %v2784, %v2833
        %v2855 = vadd.f32 %v2785, %v2833
        %v2856 = vadd.f32 %v2786, %v2833
        %v2857 = vadd.f32 %v2787, %v2833
        %v2858 = vadd.f32 %v2788, %v2833
        %v2859 = vadd.f32 %v2789, %v2833
        %v2860 = vadd.f32 %v2790, %v2833
        %v2861 = vadd.f32 %v2791, %v2833
        %v2862 = vadd.f32 %v2792, %v2833
        %v2863 = vadd.f32 %v2793, %v2833
        %v2864 = vadd.f32 %v2794, %v2833
        %v2865 = vadd.f32 %v2795, %v2833
        %v2866 = vadd.f32 %v2796, %v2833
        %v2867 = vadd.f32 %v2797, %v2833
        %v2868 = vadd.f32 %v2798, %v2833
        %v2869 = vadd.f32 %v2799, %v2833
        %v2870 = vadd.f32 %v2800, %v2833
        %v2871 = vadd.f32 %v2801, %v2833
        %v2872 = vadd.f32 %v2802, %v2833
        %v2873 = vadd.f32 %v2803, %v2833
        %v2874 = vadd.f32 %v2804, %v2833
        %v2875 = vadd.f32 %v2805, %v2833
        %v2876 = vadd.f32 %v2806, %v2833
        %v2877 = vadd.f32 %v2807, %v2833
        %v2878 = vadd.f32 %v2808, %v2833
        %v2879 = vadd.f32 %v2809, %v2833
        %v2880 = vadd.f32 %v2810, %v2833
        %v2881 = vadd.f32 %v2811, %v2833
        %v2882 = vadd.f32 %v2812, %v2833
        %v2883 = vadd.f32 %v2813, %v2833
        %v2884 = vadd.f32 %v2814, %v2833
        %v2885 = vadd.f32 %v2815, %v2833
        %v2886 = vadd.f32 %v2816, %v2833
        %v2887 = vadd.f32 %v2817, %v2833
        %v2888 = vadd.f32 %v2818, %v2833
        %v2889 = vadd.f32 %v2819, %v2833
        %v2890 = vadd.f32 %v2820, %v2833
        %v2891 = vadd.f32 %v2821, %v2833
        %v2892 = vadd.f32 %v2822, %v2833
        %v2893 = vadd.f32 %v2823, %v2833
        %v2894 = vadd.f32 %v2824, %v2833
        %v2895 = vadd.f32 %v2825, %v2833
        %v2896 = vadd.f32 %v2826, %v2833
        %v2897 = vadd.f32 %v2827, %v2833
        %v2898 = vadd.f32 %v2828, %v2833
        %vm2899 = vcmp.gt.f32.partialorder %v2835, 0.0
        %vm2900 = vcmp.gt.f32.partialorder %v2836, 0.0
        %vm2901 = vcmp.gt.f32.partialorder %v2837, 0.0
        %vm2902 = vcmp.gt.f32.partialorder %v2838, 0.0
        %vm2903 = vcmp.gt.f32.partialorder %v2839, 0.0
        %vm2904 = vcmp.gt.f32.partialorder %v2840, 0.0
        %vm2905 = vcmp.gt.f32.partialorder %v2841, 0.0
        %vm2906 = vcmp.gt.f32.partialorder %v2842, 0.0
        %vm2907 = vcmp.gt.f32.partialorder %v2843, 0.0
        %vm2908 = vcmp.gt.f32.partialorder %v2844, 0.0
        %vm2909 = vcmp.gt.f32.partialorder %v2845, 0.0
        %vm2910 = vcmp.gt.f32.partialorder %v2846, 0.0
        %vm2911 = vcmp.gt.f32.partialorder %v2847, 0.0
        %vm2912 = vcmp.gt.f32.partialorder %v2848, 0.0
        %vm2913 = vcmp.gt.f32.partialorder %v2849, 0.0
        %vm2914 = vcmp.gt.f32.partialorder %v2850, 0.0
        %vm2915 = vcmp.gt.f32.partialorder %v2851, 0.0
        %vm2916 = vcmp.gt.f32.partialorder %v2852, 0.0
        %vm2917 = vcmp.gt.f32.partialorder %v2853, 0.0
        %vm2918 = vcmp.gt.f32.partialorder %v2854, 0.0
        %vm2919 = vcmp.gt.f32.partialorder %v2855, 0.0
        %vm2920 = vcmp.gt.f32.partialorder %v2856, 0.0
        %vm2921 = vcmp.gt.f32.partialorder %v2857, 0.0
        %vm2922 = vcmp.gt.f32.partialorder %v2858, 0.0
        %vm2923 = vcmp.gt.f32.partialorder %v2859, 0.0
        %vm2924 = vcmp.gt.f32.partialorder %v2860, 0.0
        %vm2925 = vcmp.gt.f32.partialorder %v2861, 0.0
        %vm2926 = vcmp.gt.f32.partialorder %v2862, 0.0
        %vm2927 = vcmp.gt.f32.partialorder %v2863, 0.0
        %vm2928 = vcmp.gt.f32.partialorder %v2864, 0.0
        %vm2929 = vcmp.gt.f32.partialorder %v2865, 0.0
        %vm2930 = vcmp.gt.f32.partialorder %v2866, 0.0
        %vm2931 = vcmp.gt.f32.partialorder %v2867, 0.0
        %vm2932 = vcmp.gt.f32.partialorder %v2868, 0.0
        %vm2933 = vcmp.gt.f32.partialorder %v2869, 0.0
        %vm2934 = vcmp.gt.f32.partialorder %v2870, 0.0
        %vm2935 = vcmp.gt.f32.partialorder %v2871, 0.0
        %vm2936 = vcmp.gt.f32.partialorder %v2872, 0.0
        %vm2937 = vcmp.gt.f32.partialorder %v2873, 0.0
        %vm2938 = vcmp.gt.f32.partialorder %v2874, 0.0
        %vm2939 = vcmp.gt.f32.partialorder %v2875, 0.0
        %vm2940 = vcmp.gt.f32.partialorder %v2876, 0.0
        %vm2941 = vcmp.gt.f32.partialorder %v2877, 0.0
        %vm2942 = vcmp.gt.f32.partialorder %v2878, 0.0
        %vm2943 = vcmp.gt.f32.partialorder %v2879, 0.0
        %vm2944 = vcmp.gt.f32.partialorder %v2880, 0.0
        %vm2945 = vcmp.gt.f32.partialorder %v2881, 0.0
        %vm2946 = vcmp.gt.f32.partialorder %v2882, 0.0
        %vm2947 = vcmp.gt.f32.partialorder %v2883, 0.0
        %vm2948 = vcmp.gt.f32.partialorder %v2884, 0.0
        %vm2949 = vcmp.gt.f32.partialorder %v2885, 0.0
        %vm2950 = vcmp.gt.f32.partialorder %v2886, 0.0
        %vm2951 = vcmp.gt.f32.partialorder %v2887, 0.0
        %vm2952 = vcmp.gt.f32.partialorder %v2888, 0.0
        %vm2953 = vcmp.gt.f32.partialorder %v2889, 0.0
        %vm2954 = vcmp.gt.f32.partialorder %v2890, 0.0
        %vm2955 = vcmp.gt.f32.partialorder %v2891, 0.0
        %vm2956 = vcmp.gt.f32.partialorder %v2892, 0.0
        %vm2957 = vcmp.gt.f32.partialorder %v2893, 0.0
        %vm2958 = vcmp.gt.f32.partialorder %v2894, 0.0
        %vm2959 = vcmp.gt.f32.partialorder %v2895, 0.0
        %vm2960 = vcmp.gt.f32.partialorder %v2896, 0.0
        %vm2961 = vcmp.gt.f32.partialorder %v2897, 0.0
        %vm2962 = vcmp.gt.f32.partialorder %v2898, 0.0
        %v2963 = vmul.f32 %v2835, 0.2
        %v2964 = vmul.f32 %v2836, 0.2
        %v2965 = vmul.f32 %v2837, 0.2
        %v2966 = vmul.f32 %v2838, 0.2
        %v2967 = vmul.f32 %v2839, 0.2
        %v2968 = vmul.f32 %v2840, 0.2
        %v2969 = vmul.f32 %v2841, 0.2
        %v2970 = vmul.f32 %v2842, 0.2
        %v2971 = vmul.f32 %v2843, 0.2
        %v2972 = vmul.f32 %v2844, 0.2
        %v2973 = vmul.f32 %v2845, 0.2
        %v2974 = vmul.f32 %v2846, 0.2
        %v2975 = vmul.f32 %v2847, 0.2
        %v2976 = vmul.f32 %v2848, 0.2
        %v2977 = vmul.f32 %v2849, 0.2
        %v2978 = vmul.f32 %v2850, 0.2
        %v2979 = vmul.f32 %v2851, 0.2
        %v2980 = vmul.f32 %v2852, 0.2
        %v2981 = vmul.f32 %v2853, 0.2
        %v2982 = vmul.f32 %v2854, 0.2
        %v2983 = vmul.f32 %v2855, 0.2
        %v2984 = vmul.f32 %v2856, 0.2
        %v2985 = vmul.f32 %v2857, 0.2
        %v2986 = vmul.f32 %v2858, 0.2
        %v2987 = vmul.f32 %v2859, 0.2
        %v2988 = vmul.f32 %v2860, 0.2
        %v2989 = vmul.f32 %v2861, 0.2
        %v2990 = vmul.f32 %v2862, 0.2
        %v2991 = vmul.f32 %v2863, 0.2
        %v2992 = vmul.f32 %v2864, 0.2
        %v2993 = vmul.f32 %v2865, 0.2
        %v2994 = vmul.f32 %v2866, 0.2
        %v2995 = vmul.f32 %v2867, 0.2
        %v2996 = vmul.f32 %v2868, 0.2
        %v2997 = vmul.f32 %v2869, 0.2
        %v2998 = vmul.f32 %v2870, 0.2
        %v2999 = vmul.f32 %v2871, 0.2
        %v3000 = vmul.f32 %v2872, 0.2
        %v3001 = vmul.f32 %v2873, 0.2
        %v3002 = vmul.f32 %v2874, 0.2
        %v3003 = vmul.f32 %v2875, 0.2
        %v3004 = vmul.f32 %v2876, 0.2
        %v3005 = vmul.f32 %v2877, 0.2
        %v3006 = vmul.f32 %v2878, 0.2
        %v3007 = vmul.f32 %v2879, 0.2
        %v3008 = vmul.f32 %v2880, 0.2
        %v3009 = vmul.f32 %v2881, 0.2
        %v3010 = vmul.f32 %v2882, 0.2
        %v3011 = vmul.f32 %v2883, 0.2
        %v3012 = vmul.f32 %v2884, 0.2
        %v3013 = vmul.f32 %v2885, 0.2
        %v3014 = vmul.f32 %v2886, 0.2
        %v3015 = vmul.f32 %v2887, 0.2
        %v3016 = vmul.f32 %v2888, 0.2
        %v3017 = vmul.f32 %v2889, 0.2
        %v3018 = vmul.f32 %v2890, 0.2
        %v3019 = vmul.f32 %v2891, 0.2
        %v3020 = vmul.f32 %v2892, 0.2
        %v3021 = vmul.f32 %v2893, 0.2
        %v3022 = vmul.f32 %v2894, 0.2
        %v3023 = vmul.f32 %v2895, 0.2
        %v3024 = vmul.f32 %v2896, 0.2
        %v3025 = vmul.f32 %v2897, 0.2
        %v3026 = vmul.f32 %v2898, 0.2
        %v3027 = vsel %vm2899, %v2835, %v2963
        %v3028 = vsel %vm2900, %v2836, %v2964
        %v3029 = vsel %vm2901, %v2837, %v2965
        %v3030 = vsel %vm2902, %v2838, %v2966
        %v3031 = vsel %vm2903, %v2839, %v2967
        %v3032 = vsel %vm2904, %v2840, %v2968
        %v3033 = vsel %vm2905, %v2841, %v2969
        %v3034 = vsel %vm2906, %v2842, %v2970
        %v3035 = vsel %vm2907, %v2843, %v2971
        %v3036 = vsel %vm2908, %v2844, %v2972
        %v3037 = vsel %vm2909, %v2845, %v2973
        %v3038 = vsel %vm2910, %v2846, %v2974
        %v3039 = vsel %vm2911, %v2847, %v2975
        %v3040 = vsel %vm2912, %v2848, %v2976
        %v3041 = vsel %vm2913, %v2849, %v2977
        %v3042 = vsel %vm2914, %v2850, %v2978
        %v3043 = vsel %vm2915, %v2851, %v2979
        %v3044 = vsel %vm2916, %v2852, %v2980
        %v3045 = vsel %vm2917, %v2853, %v2981
        %v3046 = vsel %vm2918, %v2854, %v2982
        %v3047 = vsel %vm2919, %v2855, %v2983
        %v3048 = vsel %vm2920, %v2856, %v2984
        %v3049 = vsel %vm2921, %v2857, %v2985
        %v3050 = vsel %vm2922, %v2858, %v2986
        %v3051 = vsel %vm2923, %v2859, %v2987
        %v3052 = vsel %vm2924, %v2860, %v2988
        %v3053 = vsel %vm2925, %v2861, %v2989
        %v3054 = vsel %vm2926, %v2862, %v2990
        %v3055 = vsel %vm2927, %v2863, %v2991
        %v3056 = vsel %vm2928, %v2864, %v2992
        %v3057 = vsel %vm2929, %v2865, %v2993
        %v3058 = vsel %vm2930, %v2866, %v2994
        %v3059 = vsel %vm2931, %v2867, %v2995
        %v3060 = vsel %vm2932, %v2868, %v2996
        %v3061 = vsel %vm2933, %v2869, %v2997
        %v3062 = vsel %vm2934, %v2870, %v2998
        %v3063 = vsel %vm2935, %v2871, %v2999
        %v3064 = vsel %vm2936, %v2872, %v3000
        %v3065 = vsel %vm2937, %v2873, %v3001
        %v3066 = vsel %vm2938, %v2874, %v3002
        %v3067 = vsel %vm2939, %v2875, %v3003
        %v3068 = vsel %vm2940, %v2876, %v3004
        %v3069 = vsel %vm2941, %v2877, %v3005
        %v3070 = vsel %vm2942, %v2878, %v3006
        %v3071 = vsel %vm2943, %v2879, %v3007
        %v3072 = vsel %vm2944, %v2880, %v3008
        %v3073 = vsel %vm2945, %v2881, %v3009
        %v3074 = vsel %vm2946, %v2882, %v3010
        %v3075 = vsel %vm2947, %v2883, %v3011
        %v3076 = vsel %vm2948, %v2884, %v3012
        %v3077 = vsel %vm2949, %v2885, %v3013
        %v3078 = vsel %vm2950, %v2886, %v3014
        %v3079 = vsel %vm2951, %v2887, %v3015
        %v3080 = vsel %vm2952, %v2888, %v3016
        %v3081 = vsel %vm2953, %v2889, %v3017
        %v3082 = vsel %vm2954, %v2890, %v3018
        %v3083 = vsel %vm2955, %v2891, %v3019
        %v3084 = vsel %vm2956, %v2892, %v3020
        %v3085 = vsel %vm2957, %v2893, %v3021
        %v3086 = vsel %vm2958, %v2894, %v3022
        %v3087 = vsel %vm2959, %v2895, %v3023
        %v3088 = vsel %vm2960, %v2896, %v3024
        %v3089 = vsel %vm2961, %v2897, %v3025
        %v3090 = vsel %vm2962, %v2898, %v3026
        %3091 = vxpose.xlu0.b32.start [1/16] %v3027, 128
        %3092 = vxpose.xlu0.b32.cont [2/16] %v3028, 128
        %3093 = vxpose.xlu0.b32.cont [3/16] %v3029, 128
        %3094 = vxpose.xlu0.b32.cont [4/16] %v3030, 128
        %3095 = vxpose.xlu0.b32.cont [5/16] %v3031, 128
        %3096 = vxpose.xlu0.b32.cont [6/16] %v3032, 128
        %3097 = vxpose.xlu0.b32.cont [7/16] %v3033, 128
        %3098 = vxpose.xlu0.b32.cont [8/16] %v3034, 128
        %3099 = vxpose.xlu0.b32.cont [9/16] %v3035, 128
        %3100 = vxpose.xlu0.b32.cont [10/16] %v3036, 128
        %3101 = vxpose.xlu0.b32.cont [11/16] %v3037, 128
        %3102 = vxpose.xlu0.b32.cont [12/16] %v3038, 128
        %3103 = vxpose.xlu0.b32.cont [13/16] %v3039, 128
        %3104 = vxpose.xlu0.b32.cont [14/16] %v3040, 128
        %3105 = vxpose.xlu0.b32.cont [15/16] %v3041, 128
        %3106 = vxpose.xlu0.b32.end [16/16] %v3042, 128
        %v3107 = vpop.trf.xlu0
        %v3108 = vpop.trf.xlu0
        %v3109 = vpop.trf.xlu0
        %v3110 = vpop.trf.xlu0
        %v3111 = vpop.trf.xlu0
        %v3112 = vpop.trf.xlu0
        %v3113 = vpop.trf.xlu0
        %v3114 = vpop.trf.xlu0
        %v3115 = vpop.trf.xlu0
        %v3116 = vpop.trf.xlu0
        %v3117 = vpop.trf.xlu0
        %v3118 = vpop.trf.xlu0
        %v3119 = vpop.trf.xlu0
        %v3120 = vpop.trf.xlu0
        %v3121 = vpop.trf.xlu0
        %v3122 = vpop.trf.xlu0
        %3123 = vxpose.xlu0.b32.start [1/16] %v3043, 128
        %3124 = vxpose.xlu0.b32.cont [2/16] %v3044, 128
        %3125 = vxpose.xlu0.b32.cont [3/16] %v3045, 128
        %3126 = vxpose.xlu0.b32.cont [4/16] %v3046, 128
        %3127 = vxpose.xlu0.b32.cont [5/16] %v3047, 128
        %3128 = vxpose.xlu0.b32.cont [6/16] %v3048, 128
        %3129 = vxpose.xlu0.b32.cont [7/16] %v3049, 128
        %3130 = vxpose.xlu0.b32.cont [8/16] %v3050, 128
        %3131 = vxpose.xlu0.b32.cont [9/16] %v3051, 128
        %3132 = vxpose.xlu0.b32.cont [10/16] %v3052, 128
        %3133 = vxpose.xlu0.b32.cont [11/16] %v3053, 128
        %3134 = vxpose.xlu0.b32.cont [12/16] %v3054, 128
        %3135 = vxpose.xlu0.b32.cont [13/16] %v3055, 128
        %3136 = vxpose.xlu0.b32.cont [14/16] %v3056, 128
        %3137 = vxpose.xlu0.b32.cont [15/16] %v3057, 128
        %3138 = vxpose.xlu0.b32.end [16/16] %v3058, 128
        %v3139 = vpop.trf.xlu0
        %v3140 = vpop.trf.xlu0
        %v3141 = vpop.trf.xlu0
        %v3142 = vpop.trf.xlu0
        %v3143 = vpop.trf.xlu0
        %v3144 = vpop.trf.xlu0
        %v3145 = vpop.trf.xlu0
        %v3146 = vpop.trf.xlu0
        %v3147 = vpop.trf.xlu0
        %v3148 = vpop.trf.xlu0
        %v3149 = vpop.trf.xlu0
        %v3150 = vpop.trf.xlu0
        %v3151 = vpop.trf.xlu0
        %v3152 = vpop.trf.xlu0
        %v3153 = vpop.trf.xlu0
        %v3154 = vpop.trf.xlu0
        %3155 = vxpose.xlu0.b32.start [1/16] %v3059, 128
        %3156 = vxpose.xlu0.b32.cont [2/16] %v3060, 128
        %3157 = vxpose.xlu0.b32.cont [3/16] %v3061, 128
        %3158 = vxpose.xlu0.b32.cont [4/16] %v3062, 128
        %3159 = vxpose.xlu0.b32.cont [5/16] %v3063, 128
        %3160 = vxpose.xlu0.b32.cont [6/16] %v3064, 128
        %3161 = vxpose.xlu0.b32.cont [7/16] %v3065, 128
        %3162 = vxpose.xlu0.b32.cont [8/16] %v3066, 128
        %3163 = vxpose.xlu0.b32.cont [9/16] %v3067, 128
        %3164 = vxpose.xlu0.b32.cont [10/16] %v3068, 128
        %3165 = vxpose.xlu0.b32.cont [11/16] %v3069, 128
        %3166 = vxpose.xlu0.b32.cont [12/16] %v3070, 128
        %3167 = vxpose.xlu0.b32.cont [13/16] %v3071, 128
        %3168 = vxpose.xlu0.b32.cont [14/16] %v3072, 128
        %3169 = vxpose.xlu0.b32.cont [15/16] %v3073, 128
        %3170 = vxpose.xlu0.b32.end [16/16] %v3074, 128
        %v3171 = vpop.trf.xlu0
        %v3172 = vpop.trf.xlu0
        %v3173 = vpop.trf.xlu0
        %v3174 = vpop.trf.xlu0
        %v3175 = vpop.trf.xlu0
        %v3176 = vpop.trf.xlu0
        %v3177 = vpop.trf.xlu0
        %v3178 = vpop.trf.xlu0
        %v3179 = vpop.trf.xlu0
        %v3180 = vpop.trf.xlu0
        %v3181 = vpop.trf.xlu0
        %v3182 = vpop.trf.xlu0
        %v3183 = vpop.trf.xlu0
        %v3184 = vpop.trf.xlu0
        %v3185 = vpop.trf.xlu0
        %v3186 = vpop.trf.xlu0
        %3187 = vxpose.xlu0.b32.start [1/16] %v3075, 128
        %3188 = vxpose.xlu0.b32.cont [2/16] %v3076, 128
        %3189 = vxpose.xlu0.b32.cont [3/16] %v3077, 128
        %3190 = vxpose.xlu0.b32.cont [4/16] %v3078, 128
        %3191 = vxpose.xlu0.b32.cont [5/16] %v3079, 128
        %3192 = vxpose.xlu0.b32.cont [6/16] %v3080, 128
        %3193 = vxpose.xlu0.b32.cont [7/16] %v3081, 128
        %3194 = vxpose.xlu0.b32.cont [8/16] %v3082, 128
        %3195 = vxpose.xlu0.b32.cont [9/16] %v3083, 128
        %3196 = vxpose.xlu0.b32.cont [10/16] %v3084, 128
        %3197 = vxpose.xlu0.b32.cont [11/16] %v3085, 128
        %3198 = vxpose.xlu0.b32.cont [12/16] %v3086, 128
        %3199 = vxpose.xlu0.b32.cont [13/16] %v3087, 128
        %3200 = vxpose.xlu0.b32.cont [14/16] %v3088, 128
        %3201 = vxpose.xlu0.b32.cont [15/16] %v3089, 128
        %3202 = vxpose.xlu0.b32.end [16/16] %v3090, 128
        %v3203 = vpop.trf.xlu0
        %v3204 = vpop.trf.xlu0
        %v3205 = vpop.trf.xlu0
        %v3206 = vpop.trf.xlu0
        %v3207 = vpop.trf.xlu0
        %v3208 = vpop.trf.xlu0
        %v3209 = vpop.trf.xlu0
        %v3210 = vpop.trf.xlu0
        %v3211 = vpop.trf.xlu0
        %v3212 = vpop.trf.xlu0
        %v3213 = vpop.trf.xlu0
        %v3214 = vpop.trf.xlu0
        %v3215 = vpop.trf.xlu0
        %v3216 = vpop.trf.xlu0
        %v3217 = vpop.trf.xlu0
        %v3218 = vpop.trf.xlu0
        %3219 = vst [vmem:[%s4] sm:$0xff] %v3107
        %3220 = vst [vmem:[%s4 + $0x8] sm:$0xff] %v3139
        %3221 = vst [vmem:[%s4 + $0x10] sm:$0xff] %v3108
        %3222 = vst [vmem:[%s4 + $0x18] sm:$0xff] %v3140
        %3223 = vst [vmem:[%s4 + $0x20] sm:$0xff] %v3109
        %3224 = vst [vmem:[%s4 + $0x28] sm:$0xff] %v3141
        %3225 = vst [vmem:[%s4 + $0x30] sm:$0xff] %v3110
        %3226 = vst [vmem:[%s4 + $0x38] sm:$0xff] %v3142
        %3227 = vst [vmem:[%s4 + $0x40] sm:$0xff] %v3111
        %3228 = vst [vmem:[%s4 + $0x48] sm:$0xff] %v3143
        %3229 = vst [vmem:[%s4 + $0x50] sm:$0xff] %v3112
        %3230 = vst [vmem:[%s4 + $0x58] sm:$0xff] %v3144
        %3231 = vst [vmem:[%s4 + $0x60] sm:$0xff] %v3113
        %3232 = vst [vmem:[%s4 + $0x68] sm:$0xff] %v3145
        %3233 = vst [vmem:[%s4 + $0x70] sm:$0xff] %v3114
        %3234 = vst [vmem:[%s4 + $0x78] sm:$0xff] %v3146
        %3235 = vst [vmem:[%s4 + $0x80] sm:$0xff] %v3171
        %3236 = vst [vmem:[%s4 + $0x88] sm:$0xff] %v3203
        %3237 = vst [vmem:[%s4 + $0x90] sm:$0xff] %v3172
        %3238 = vst [vmem:[%s4 + $0x98] sm:$0xff] %v3204
        %3239 = vst [vmem:[%s4 + $0xa0] sm:$0xff] %v3173
        %3240 = vst [vmem:[%s4 + $0xa8] sm:$0xff] %v3205
        %3241 = vst [vmem:[%s4 + $0xb0] sm:$0xff] %v3174
        %3242 = vst [vmem:[%s4 + $0xb8] sm:$0xff] %v3206
        %3243 = vst [vmem:[%s4 + $0xc0] sm:$0xff] %v3175
        %3244 = vst [vmem:[%s4 + $0xc8] sm:$0xff] %v3207
        %3245 = vst [vmem:[%s4 + $0xd0] sm:$0xff] %v3176
        %3246 = vst [vmem:[%s4 + $0xd8] sm:$0xff] %v3208
        %3247 = vst [vmem:[%s4 + $0xe0] sm:$0xff] %v3177
        %3248 = vst [vmem:[%s4 + $0xe8] sm:$0xff] %v3209
        %3249 = vst [vmem:[%s4 + $0xf0] sm:$0xff] %v3178
        %3250 = vst [vmem:[%s4 + $0xf8] sm:$0xff] %v3210
      $region40: #{basic_conv2d_forward.1} parent=35 // pred_fallthru
        _
      // Predicated region
      $region41: #{basic_conv2d_forward.1} parent=35 // pred_check
        %p3251 = pneg %p117
      $region42: #{basic_conv2d_forward.1} parent=35 // pred_check_branch
        %3253 = sbr.rel (%p3251) target = $region44
      $region43: #{basic_conv2d_forward.1} parent=35 // pred_region
        _
      $region44: #{basic_conv2d_forward.1} parent=35 // pred_fallthru
        _
      // Predicated region
      $region45: #{basic_conv2d_forward.1} parent=35 // pred_check
        %p3254 = pneg %p117
      $region46: #{basic_conv2d_forward.1} parent=35 // pred_check_branch
        %3256 = sbr.rel (%p3254) target = $region48
      $region47: #{basic_conv2d_forward.1} parent=35 // pred_region
        _
      $region48: #{basic_conv2d_forward.1} parent=35 // pred_fallthru
        _
    $region36: #{basic_conv2d_forward.1} parent=5 // pred_fallthru
      _
    %p3257 = scmp.le.s32.totalorder 2, %s10
    // Predicated region
    $region49: #{basic_conv2d_forward.1} parent=5 // pred_check
      %p3258 = pneg %p3257
    $region50: #{basic_conv2d_forward.1} parent=5 // pred_check_branch
      %3260 = sbr.rel (%p3258) target = $region52
    $region51: #{basic_conv2d_forward.1} parent=5 // pred_region
      %s3261 = ssub.s32 %s10, 2
    $region52: #{basic_conv2d_forward.1} parent=5 // pred_fallthru
      _
  $region6: #{basic_conv2d_forward.1} parent=0 // loop_footer
    %s14 = sadd.s32 1, %s10
  $region7: #{basic_conv2d_forward.1} parent=0 // loop_footer_branch
    %9 = sbr.rel target = $region3
  $region8: #{basic_conv2d_forward.1} parent=0 // loop_exit
    _

</llo_original>
